<compile_context>
chip_gen: v7x
topology: tpu7x:2x2x1
jax: 0.10.0
libtpu: 0.0.40
codegen_flags: <defaults>
</compile_context>

<pallas_src>
import functools

import jax
import jax.numpy as jnp
from jax.experimental import pallas as pl
from jax.experimental.pallas import tpu as pltpu

BN_EPS = 1e-5
_INV_SQRT2 = 0.7071067811865476


def _round_up(x, m):
  return (x + m - 1) // m * m


# ---------------------------------------------------------------------------
# Pallas kernels
# ---------------------------------------------------------------------------
def _deconv_stats_kernel(col_ref, w_ref, y_ref, stat_ref):
  """bf16 MXU GEMM (f32 accumulate) + per-tile BatchNorm sum / sum-of-squares."""
  y = jnp.dot(col_ref[...], w_ref[...], preferred_element_type=jnp.float32)
  y_ref[...] = y.astype(y_ref.dtype)                 # store bf16 intermediate
  s = jnp.sum(y, axis=0, keepdims=True)              # (1, Cp) f32
  sq = jnp.sum(y * y, axis=0, keepdims=True)         # (1, Cp) f32
  # Only rows 0/1 of the (8, Cp) stats block carry data; rows 2..7 are never
  # read by the glue, so we skip the zero-fill (saves 6 rows of vector stores).
  stat_ref[0:2, :] = jnp.concatenate([s, sq], axis=0)


def _bn_gelu_kernel(y_ref, scale_ref, shift_ref, o_ref):
  """Affine-folded BatchNorm + exact (erf) GELU, computed in f32."""
  x = y_ref[...].astype(jnp.float32) * scale_ref[...] + shift_ref[...]
  o_ref[...] = 0.5 * x * (1.0 + jax.lax.erf(x * _INV_SQRT2))


# ---------------------------------------------------------------------------
# Wrapper
# ---------------------------------------------------------------------------
@functools.partial(jax.jit, static_argnames=("tm",))
def octree_deconv_bn_elu(data, neigh, weight, gamma, beta, *, tm=512):
  """data: (N, Cin) f32; neigh: (N, K) int32 (-1 == missing); weight: (K, Cin, Cout)."""
  N, Cin = data.shape
  K = neigh.shape[1]
  Cout = weight.shape[2]
  KC = K * Cin                         # contraction depth (full, no padding)
  Cp = _round_up(Cout, 128)            # lane-dense output channels

  # Node-tile size: keep >= 4 grid steps when N allows so v7x's two TensorCores
  # both get work and each still pipelines (dimension_semantics=("parallel",)).
  tm_eff = tm
  while tm_eff > 256 and pl.cdiv(N, tm_eff) < 4:
    tm_eff //= 2
  Np = _round_up(N, tm_eff)
  n_tiles = Np // tm_eff

  # --- octree2col gather (XLA glue), emitted directly at padded size in bf16.
  # Zero padding is exact: zero rows (missing neighbors / row padding) and the
  # zero-padded output channels contribute exactly 0 to the GEMM and to the BN
  # statistics, which are divided by the TRUE node count N below.
  neigh_p = jnp.pad(neigh, ((0, Np - N), (0, 0)), constant_values=-1)
  safe = jnp.clip(neigh_p, 0, N - 1)
  gathered = jnp.where((neigh_p >= 0)[..., None], data[safe], 0.0)  # (Np,K,Cin)
  col = gathered.reshape(Np, KC).astype(jnp.bfloat16)               # (Np, KC)

  w2d = jnp.pad(weight.reshape(KC, Cout), ((0, 0), (0, Cp - Cout)))
  w2d = w2d.astype(jnp.bfloat16)                                    # (KC, Cp)

  cparams = pltpu.CompilerParams(
      dimension_semantics=("parallel",),
      vmem_limit_bytes=32 * 1024 * 1024)  # safe on v7x (64 MiB), ample elsewhere
  # TODO(synk): for very large Cin (KC*Cp weight >> VMEM) add a K-axis
  #   "arbitrary" grid dim with a VMEM f32 accumulator and single-buffer the
  #   weight BlockSpec; unnecessary at these sizes.

  cost1 = pl.CostEstimate(
      flops=2 * Np * KC * Cp,
      transcendentals=0,
      bytes_accessed=Np * KC * 2 + KC * Cp * 2 + Np * Cp * 2
                     + n_tiles * 8 * Cp * 4)

  # --- pass 1: OctreeDeconv GEMM (bf16 MXU) fused with BN statistics ---------
  y, stats = pl.pallas_call(
      _deconv_stats_kernel,
      out_shape=(jax.ShapeDtypeStruct((Np, Cp), jnp.bfloat16),
                 jax.ShapeDtypeStruct((n_tiles * 8, Cp), jnp.float32)),
      grid_spec=pltpu.PrefetchScalarGridSpec(
          num_scalar_prefetch=0, grid=(n_tiles,),
          in_specs=[pl.BlockSpec((tm_eff, KC), lambda i: (i, 0)),
                    pl.BlockSpec((KC, Cp), lambda i: (0, 0))],
          out_specs=(pl.BlockSpec((tm_eff, Cp), lambda i: (i, 0)),
                     pl.BlockSpec((8, Cp), lambda i: (i, 0)))),
      compiler_params=cparams,
      cost_estimate=cost1,
  )(col, w2d)

  # --- tiny scalar glue: fold mean/var/gamma/beta into scale & shift ---------
  stats = stats.reshape(n_tiles, 8, Cp)
  s = jnp.sum(stats[:, 0, :], axis=0)            # padded/zero rows contribute 0
  sq = jnp.sum(stats[:, 1, :], axis=0)
  mean = s / N                                   # divide by TRUE node count
  var = jnp.maximum(sq / N - mean * mean, 0.0)   # clamp f32 cancellation
  # TODO(synk): switch to a per-tile mean-corrected (Welford) combine if large
  #   activation magnitudes ever make the E[x^2]-E[x]^2 cancellation visible.
  invstd = jax.lax.rsqrt(var + BN_EPS)
  gamma_p = jnp.pad(gamma, (0, Cp - Cout))
  beta_p = jnp.pad(beta, (0, Cp - Cout))
  scale = (gamma_p * invstd)[None, :]
  shift = (beta_p - mean * gamma_p * invstd)[None, :]

  cost2 = pl.CostEstimate(
      flops=8 * Np * Cp,
      transcendentals=Np * Cp,
      bytes_accessed=Np * Cp * 2 + 2 * Cp * 4 + Np * Cp * 4)

  # --- pass 2: normalize + exact GELU (HBM-bound; bf16 y halves re-read) -----
  out = pl.pallas_call(
      _bn_gelu_kernel,
      out_shape=jax.ShapeDtypeStruct((Np, Cp), jnp.float32),
      grid_spec=pltpu.PrefetchScalarGridSpec(
          num_scalar_prefetch=0, grid=(n_tiles,),
          in_specs=[pl.BlockSpec((tm_eff, Cp), lambda i: (i, 0)),
                    pl.BlockSpec((1, Cp), lambda i: (0, 0)),
                    pl.BlockSpec((1, Cp), lambda i: (0, 0))],
          out_specs=pl.BlockSpec((tm_eff, Cp), lambda i: (i, 0))),
      compiler_params=cparams,
      cost_estimate=cost2,
  )(y, scale, shift)

  return out[:N, :Cout]


# ---------------------------------------------------------------------------
# Demo
# ---------------------------------------------------------------------------
if __name__ == "__main__":
  key = jax.random.PRNGKey(0)
  k_x, k_n, k_w = jax.random.split(key, 3)

  N, Cin, Cout = 1000, 16, 128         # octree nodes at `depth`, channels
  K = 27                               # kernel_size=[3] -> 3x3x3 neighborhood

  data = jax.random.normal(k_x, (N, Cin), dtype=jnp.float32)
  # synthetic octree neighbor table; -1 marks a missing neighbor
  neigh = jax.random.randint(k_n, (N, K), -1, N).astype(jnp.int32)
  weight = 0.1 * jax.random.normal(k_w, (K, Cin, Cout), dtype=jnp.float32)
  gamma = jnp.ones((Cout,), jnp.float32)     # BatchNorm1d default affine init
  beta = jnp.zeros((Cout,), jnp.float32)

  out = octree_deconv_bn_elu(data, neigh, weight, gamma, beta, tm=512)
  jax.block_until_ready(out)
  assert out.shape == (N, Cout) and out.dtype == jnp.float32
  assert bool(jnp.isfinite(out).all())
  print("KERNEL_OK")
</pallas_src>

<mosaic_0001>
module attributes {stable_mosaic.version = 11 : i64} {
  func.func @_deconv_stats_kernel(%arg0: i32, %arg1: memref<256x432xbf16, #tpu.memory_space<vmem>>, %arg2: memref<432x128xbf16, #tpu.memory_space<vmem>>, %arg3: memref<256x128xbf16, #tpu.memory_space<vmem>>, %arg4: memref<8x128xf32, #tpu.memory_space<vmem>>) attributes {dimension_semantics = [#tpu.dimension_semantics<parallel>], iteration_bounds = array<i64: 4>, scalar_prefetch = 0 : i64, scratch_operands = 0 : i64, tpu.core_type = #tpu.core_type<tc>, window_params = [{transform_indices = @transform_0, window_bounds = array<i64: 256, 432>}, {pipeline_mode = #tpu.pipeline_mode<synchronous>, transform_indices = @transform_1, window_bounds = array<i64: 432, 128>}, {transform_indices = @transform_2, window_bounds = array<i64: 256, 128>}, {transform_indices = @transform_3, window_bounds = array<i64: 8, 128>}]} {
    %c0 = arith.constant 0 : index
    %c0_0 = arith.constant 0 : index
    %0 = vector.load %arg1[%c0, %c0_0] : memref<256x432xbf16, #tpu.memory_space<vmem>>, vector<256x432xbf16>
    %c0_1 = arith.constant 0 : index
    %c0_2 = arith.constant 0 : index
    %1 = vector.load %arg2[%c0_1, %c0_2] : memref<432x128xbf16, #tpu.memory_space<vmem>>, vector<432x128xbf16>
    %cst = arith.constant dense<0.000000e+00> : vector<256x128xf32>
    %2 = tpu.matmul %0, %1, %cst {dimension_numbers = #tpu.dot_dimension_numbers<[1], [0], [0], [1], [0, 0, 1, 1], [], []>} : vector<256x432xbf16>, vector<432x128xbf16>, vector<256x128xf32> -> vector<256x128xf32>
    %3 = arith.truncf %2 : vector<256x128xf32> to vector<256x128xbf16>
    %c0_3 = arith.constant 0 : index
    %c0_4 = arith.constant 0 : index
    %4 = vector.load %arg3[%c0_3, %c0_4] : memref<256x128xbf16, #tpu.memory_space<vmem>>, vector<256x128xbf16>
    tpu.vector_store %arg3[%c0_3, %c0_4], %3 {strides = array<i32>} : memref<256x128xbf16, #tpu.memory_space<vmem>>, vector<256x128xbf16>,
    %cst_5 = arith.constant dense<0.000000e+00> : vector<128xf32>
    %5 = vector.multi_reduction <add>, %2, %cst_5 [0] : vector<256x128xf32> to vector<128xf32>
    %6 = vector.shape_cast %5 : vector<128xf32> to vector<1x128xf32>
    %7 = arith.mulf %2, %2 : vector<256x128xf32>
    %cst_6 = arith.constant dense<0.000000e+00> : vector<128xf32>
    %8 = vector.multi_reduction <add>, %7, %cst_6 [0] : vector<256x128xf32> to vector<128xf32>
    %9 = vector.shape_cast %8 : vector<128xf32> to vector<1x128xf32>
    %10 = tpu.concatenate %6, %9 in 0 : vector<1x128xf32>, vector<1x128xf32> -> vector<2x128xf32>
    %c0_7 = arith.constant 0 : index
    %c0_8 = arith.constant 0 : index
    %11 = vector.load %arg4[%c0_7, %c0_8] : memref<8x128xf32, #tpu.memory_space<vmem>>, vector<2x128xf32>
    tpu.vector_store %arg4[%c0_7, %c0_8], %10 {strides = array<i32>} : memref<8x128xf32, #tpu.memory_space<vmem>>, vector<2x128xf32>,
    return
  }
  func.func @transform_0(%arg0: i32) -> (i32, i32) {
    %c0_i32 = arith.constant 0 : i32
    %c0_i32_0 = arith.constant 0 : i32
    return %arg0, %c0_i32 : i32, i32
  }
  func.func @transform_1(%arg0: i32) -> (i32, i32) {
    %c0_i32 = arith.constant 0 : i32
    %c0_i32_0 = arith.constant 0 : i32
    %c0_i32_1 = arith.constant 0 : i32
    return %c0_i32, %c0_i32_0 : i32, i32
  }
  func.func @transform_2(%arg0: i32) -> (i32, i32) {
    %c0_i32 = arith.constant 0 : i32
    %c0_i32_0 = arith.constant 0 : i32
    return %arg0, %c0_i32 : i32, i32
  }
  func.func @transform_3(%arg0: i32) -> (i32, i32) {
    %c0_i32 = arith.constant 0 : i32
    %c0_i32_0 = arith.constant 0 : i32
    return %arg0, %c0_i32 : i32, i32
  }
}

module attributes {stable_mosaic.version = 11 : i64} {
  func.func @_bn_gelu_kernel(%arg0: i32, %arg1: memref<256x128xbf16, #tpu.memory_space<vmem>>, %arg2: memref<1x128xf32, #tpu.memory_space<vmem>>, %arg3: memref<1x128xf32, #tpu.memory_space<vmem>>, %arg4: memref<256x128xf32, #tpu.memory_space<vmem>>) attributes {dimension_semantics = [#tpu.dimension_semantics<parallel>], iteration_bounds = array<i64: 4>, scalar_prefetch = 0 : i64, scratch_operands = 0 : i64, tpu.core_type = #tpu.core_type<tc>, window_params = [{transform_indices = @transform_0, window_bounds = array<i64: 256, 128>}, {pipeline_mode = #tpu.pipeline_mode<synchronous>, transform_indices = @transform_1, window_bounds = array<i64: 1, 128>}, {pipeline_mode = #tpu.pipeline_mode<synchronous>, transform_indices = @transform_2, window_bounds = array<i64: 1, 128>}, {transform_indices = @transform_3, window_bounds = array<i64: 256, 128>}]} {
    %c0 = arith.constant 0 : index
    %c0_0 = arith.constant 0 : index
    %0 = vector.load %arg1[%c0, %c0_0] : memref<256x128xbf16, #tpu.memory_space<vmem>>, vector<256x128xbf16>
    %1 = arith.extf %0 : vector<256x128xbf16> to vector<256x128xf32>
    %c0_1 = arith.constant 0 : index
    %c0_2 = arith.constant 0 : index
    %2 = vector.load %arg2[%c0_1, %c0_2] : memref<1x128xf32, #tpu.memory_space<vmem>>, vector<1x128xf32>
    %3 = vector.broadcast %2 : vector<1x128xf32> to vector<256x128xf32>
    %4 = arith.mulf %1, %3 : vector<256x128xf32>
    %c0_3 = arith.constant 0 : index
    %c0_4 = arith.constant 0 : index
    %5 = vector.load %arg3[%c0_3, %c0_4] : memref<1x128xf32, #tpu.memory_space<vmem>>, vector<1x128xf32>
    %6 = vector.broadcast %5 : vector<1x128xf32> to vector<256x128xf32>
    %7 = arith.addf %4, %6 : vector<256x128xf32>
    %cst = arith.constant 5.000000e-01 : f32
    %8 = vector.broadcast %cst : f32 to vector<256x128xf32>
    %9 = arith.mulf %8, %7 : vector<256x128xf32>
    %cst_5 = arith.constant 0.707106769 : f32
    %10 = vector.broadcast %cst_5 : f32 to vector<256x128xf32>
    %11 = arith.mulf %7, %10 : vector<256x128xf32>
    %12 = math.erf %11 : vector<256x128xf32>
    %cst_6 = arith.constant 1.000000e+00 : f32
    %13 = vector.broadcast %cst_6 : f32 to vector<256x128xf32>
    %14 = arith.addf %13, %12 : vector<256x128xf32>
    %15 = arith.mulf %9, %14 : vector<256x128xf32>
    %c0_7 = arith.constant 0 : index
    %c0_8 = arith.constant 0 : index
    %16 = vector.load %arg4[%c0_7, %c0_8] : memref<256x128xf32, #tpu.memory_space<vmem>>, vector<256x128xf32>
    tpu.vector_store %arg4[%c0_7, %c0_8], %15 {strides = array<i32>} : memref<256x128xf32, #tpu.memory_space<vmem>>, vector<256x128xf32>,
    return
  }
  func.func @transform_0(%arg0: i32) -> (i32, i32) {
    %c0_i32 = arith.constant 0 : i32
    %c0_i32_0 = arith.constant 0 : i32
    return %arg0, %c0_i32 : i32, i32
  }
  func.func @transform_1(%arg0: i32) -> (i32, i32) {
    %c0_i32 = arith.constant 0 : i32
    %c0_i32_0 = arith.constant 0 : i32
    %c0_i32_1 = arith.constant 0 : i32
    return %c0_i32, %c0_i32_0 : i32, i32
  }
  func.func @transform_2(%arg0: i32) -> (i32, i32) {
    %c0_i32 = arith.constant 0 : i32
    %c0_i32_0 = arith.constant 0 : i32
    %c0_i32_1 = arith.constant 0 : i32
    return %c0_i32, %c0_i32_0 : i32, i32
  }
  func.func @transform_3(%arg0: i32) -> (i32, i32) {
    %c0_i32 = arith.constant 0 : i32
    %c0_i32_0 = arith.constant 0 : i32
    return %arg0, %c0_i32 : i32, i32
  }
}

</mosaic_0001>

<llo_original>
// kernel: octree_deconv_bn_elu.2
$region0: #{octree_deconv_bn_elu.2}
  #allocation0 [shape = 'u32[]', space=smem, size = 0x4, offset = 0x4, fixed_abs, tag = 'smem constant byte address 0x4 - core index']
  #allocation1 [shape = 'u32[144,128]{1,0:T(1,128)}', space=vmem, size = 0x12000, scoped, tag = 'internal scratch']
  %s0 = inlined_call_operand.vmem [shape: bf16[1024,432], index: 0, kind: input, shape index: {}]
  %s1 = inlined_call_operand.vmem [shape: bf16[432,128], index: 1, kind: input, shape index: {}]
  %s2 = inlined_call_operand.vmem [shape: bf16[1024,128], index: 2, kind: output, shape index: {0}]
  %s3 = inlined_call_operand.vmem [shape: f32[32,128], index: 3, kind: output, shape index: {1}]
  %4 = xla_tuple %s2, %s3
  %s5 = sld [smem:[#allocation0]]
  $region49: #{octree_deconv_bn_elu.2} parent=0
    _
  %s7 = ssub.s32 1, %s5
  %s8 = scalar_select 0, %s7, %s5
  loop: start=0, step=1, limit=6
  $region2: #{octree_deconv_bn_elu.2} parent=0 // loop_pre_header
    _
  $region3: #{octree_deconv_bn_elu.2} parent=0 // loop_header
    %s10 = sphi 0, %s14
    %p11 = scmp.ge.s32.totalorder %s10, 6
    %s20 = sphi 0, %s22
    %s23 = sphi 0, %s20
    %s24 = sphi 0, %s23
    %s40 = sphi 0, %s24
    %s44 = sphi 0, %s44
    %s46 = sphi 0, %s44
    %s47 = sphi 0, %s46
    %s61 = sphi 0, %s47
    %s67 = sphi 0, %s69
    %s70 = sphi 0, %s67
    %s71 = sphi 0, %s70
    %s87 = sphi 0, %s71
    %s93 = sphi 0, %s95
    %s96 = sphi 0, %s93
    %s97 = sphi 0, %s96
    %s113 = sphi 0, %s97
  $region4: #{octree_deconv_bn_elu.2} parent=0 // loop_header_branch
    %13 = sbr.rel (%p11) target = $region8
  $region5: #{octree_deconv_bn_elu.2} parent=0 // loop_body
    %s15 = ssub.s32 %s10, 1
    %s16 = ssub.s32 %s10, 2
    %s17 = sadd.s32 %s10, 1
    %s18 = ssub.s32 %s10, %s17
    %p19 = scmp.eq.s32.totalorder %s18, 0
    %s21 = sadd.s32 %s20, 1
    %s22 = scalar_select %p19, %s20, %s21
    %p25 = pneg %p19
    %p26 = scmp.eq.s32.totalorder %s10, 3
    %p27 = por %p25, %p26
    %p28 = scmp.ne.s32.totalorder %s20, %s23
    %p29 = scmp.eq.s32.totalorder %s10, 0
    %p30 = por %p28, %p29
    %p31 = scmp.ne.s32.totalorder %s20, %s23
    %p32 = scmp.eq.s32.totalorder %s15, 3
    %p33 = por %p31, %p32
    %p34 = scmp.ne.s32.totalorder %s23, %s24
    %p35 = scmp.eq.s32.totalorder %s15, 0
    %p36 = por %p34, %p35
    %p37 = scmp.ne.s32.totalorder %s23, %s24
    %p38 = scmp.eq.s32.totalorder %s16, 3
    %p39 = por %p37, %p38
    %p41 = scmp.ne.s32.totalorder %s24, %s40
    %p42 = scmp.eq.s32.totalorder %s16, 0
    %p43 = por %p41, %p42
    %s45 = sadd.s32 %s44, 1
    %p48 = scmp.eq.s32.totalorder %s10, 3
    %p49 = scmp.ne.s32.totalorder %s44, %s46
    %p50 = scmp.eq.s32.totalorder %s10, 0
    %p51 = por %p49, %p50
    %p52 = scmp.ne.s32.totalorder %s44, %s46
    %p53 = scmp.eq.s32.totalorder %s15, 3
    %p54 = por %p52, %p53
    %p55 = scmp.ne.s32.totalorder %s46, %s47
    %p56 = scmp.eq.s32.totalorder %s15, 0
    %p57 = por %p55, %p56
    %p58 = scmp.ne.s32.totalorder %s46, %s47
    %p59 = scmp.eq.s32.totalorder %s16, 3
    %p60 = por %p58, %p59
    %p62 = scmp.ne.s32.totalorder %s47, %s61
    %p63 = scmp.eq.s32.totalorder %s16, 0
    %p64 = por %p62, %p63
    %s65 = ssub.s32 %s10, %s17
    %p66 = scmp.eq.s32.totalorder %s65, 0
    %s68 = sadd.s32 %s67, 1
    %s69 = scalar_select %p66, %s67, %s68
    %p72 = pneg %p66
    %p73 = scmp.eq.s32.totalorder %s10, 3
    %p74 = por %p72, %p73
    %p75 = scmp.ne.s32.totalorder %s67, %s70
    %p76 = scmp.eq.s32.totalorder %s10, 0
    %p77 = por %p75, %p76
    %p78 = scmp.ne.s32.totalorder %s67, %s70
    %p79 = scmp.eq.s32.totalorder %s15, 3
    %p80 = por %p78, %p79
    %p81 = scmp.ne.s32.totalorder %s70, %s71
    %p82 = scmp.eq.s32.totalorder %s15, 0
    %p83 = por %p81, %p82
    %p84 = scmp.ne.s32.totalorder %s70, %s71
    %p85 = scmp.eq.s32.totalorder %s16, 3
    %p86 = por %p84, %p85
    %p88 = scmp.ne.s32.totalorder %s71, %s87
    %p89 = scmp.eq.s32.totalorder %s16, 0
    %p90 = por %p88, %p89
    %s91 = ssub.s32 %s10, %s17
    %p92 = scmp.eq.s32.totalorder %s91, 0
    %s94 = sadd.s32 %s93, 1
    %s95 = scalar_select %p92, %s93, %s94
    %p98 = pneg %p92
    %p99 = scmp.eq.s32.totalorder %s10, 3
    %p100 = por %p98, %p99
    %p101 = scmp.ne.s32.totalorder %s93, %s96
    %p102 = scmp.eq.s32.totalorder %s10, 0
    %p103 = por %p101, %p102
    %p104 = scmp.ne.s32.totalorder %s93, %s96
    %p105 = scmp.eq.s32.totalorder %s15, 3
    %p106 = por %p104, %p105
    %p107 = scmp.ne.s32.totalorder %s96, %s97
    %p108 = scmp.eq.s32.totalorder %s15, 0
    %p109 = por %p107, %p108
    %p110 = scmp.ne.s32.totalorder %s96, %s97
    %p111 = scmp.eq.s32.totalorder %s16, 3
    %p112 = por %p110, %p111
    %p114 = scmp.ne.s32.totalorder %s97, %s113
    %p115 = scmp.eq.s32.totalorder %s16, 0
    %p116 = por %p114, %p115
    %p117 = scmp.le.s32.totalorder 1, %s10
    %p118 = scmp.lt.s32.totalorder %s10, 5
    %p119 = pnand %p117, %p118
    %p120 = pneg %p119
    // Predicated region
    $region9: #{octree_deconv_bn_elu.2} parent=5 // pred_check
      _
    $region10: #{octree_deconv_bn_elu.2} parent=5 // pred_check_branch
      %122 = sbr.rel (%p119) target = $region12
    $region11: #{octree_deconv_bn_elu.2} parent=5 // pred_region
      %s123 = ssub.s32 %s10, 1
      // Predicated region
      $region13: #{octree_deconv_bn_elu.2} parent=11 // pred_check
        %p124 = pneg %p57
      $region14: #{octree_deconv_bn_elu.2} parent=11 // pred_check_branch
        %126 = sbr.rel (%p124) target = $region16
      $region15: #{octree_deconv_bn_elu.2} parent=11 // pred_region
        _
      $region16: #{octree_deconv_bn_elu.2} parent=11 // pred_fallthru
        _
    $region12: #{octree_deconv_bn_elu.2} parent=5 // pred_fallthru
      _
    %p127 = scmp.lt.s32.totalorder %s10, 4
    // Predicated region
    $region17: #{octree_deconv_bn_elu.2} parent=5 // pred_check
      %p128 = pneg %p127
    $region18: #{octree_deconv_bn_elu.2} parent=5 // pred_check_branch
      %130 = sbr.rel (%p128) target = $region20
    $region19: #{octree_deconv_bn_elu.2} parent=5 // pred_region
      // Predicated region
      $region21: #{octree_deconv_bn_elu.2} parent=19 // pred_check
        %p131 = pneg %p30
      $region22: #{octree_deconv_bn_elu.2} parent=19 // pred_check_branch
        %133 = sbr.rel (%p131) target = $region24
      $region23: #{octree_deconv_bn_elu.2} parent=19 // pred_region
        %s134 = smul.u32 32, %s10
        %p135 = scmp.lt.s32.totalorder %s134, 127
        %s136 = scalar_select %p135, %s134, 127
        %s137 = smul.addr %s136, 4
        %s138 = smul.addr %s137, 4
        %s139 = scalar_lea.vmem %s0, %s138
        %s140 = smul.u32 32, %s10
      $region24: #{octree_deconv_bn_elu.2} parent=19 // pred_fallthru
        _
    $region20: #{octree_deconv_bn_elu.2} parent=5 // pred_fallthru
      _
    %p141 = scmp.le.s32.totalorder 1, %s10
    %p142 = scmp.lt.s32.totalorder %s10, 5
    %p143 = pnand %p141, %p142
    %p144 = pneg %p143
    // Predicated region
    $region25: #{octree_deconv_bn_elu.2} parent=5 // pred_check
      _
    $region26: #{octree_deconv_bn_elu.2} parent=5 // pred_check_branch
      %146 = sbr.rel (%p143) target = $region28
    $region27: #{octree_deconv_bn_elu.2} parent=5 // pred_region
      %s147 = ssub.s32 %s10, 1
      %s148 = smul.u32 32, %s15
      %p149 = scmp.lt.s32.totalorder %s148, 127
      %s150 = scalar_select %p149, %s148, 127
      %s151 = smul.addr %s150, 4
      %s152 = smul.addr %s151, 4
      %s153 = scalar_lea.vmem %s0, %s152
      %p154 = pneg %p36
      %p155 = pneg %p33
      %p156 = pneg %p57
      %p157 = pneg %p54
      %p158 = pneg %p83
      %p159 = pneg %p80
      %s160 = smul.u32 32, %s15
      %p161 = scmp.lt.s32.totalorder %s160, 127
      %s162 = scalar_select %p161, %s160, 127
      %s163 = smul.addr %s162, 4
      %s164 = scalar_lea.vmem %s2, %s163
      %p165 = pneg %p109
      %p166 = pneg %p106
      %p167 = scmp.lt.s32.totalorder %s15, 3
      %s168 = scalar_select %p167, %s15, 3
      %s169 = smul.addr %s168, 8
      %s170 = scalar_lea.vmem %s3, %s169
      %s171 = smul.u32 32, %s15
      %p172 = scmp.lt.s32.totalorder %s171, 127
      %s173 = scalar_select %p172, %s171, 127
      %s174 = smul.addr %s173, 4
      %s175 = smul.addr %s174, 4
      %s176 = scalar_lea.vmem %s0, %s175
      %s177 = smul.u32 32, %s15
      %s178 = smul.u32 32, %s15
      %p179 = scmp.lt.s32.totalorder %s178, 127
      %s180 = scalar_select %p179, %s178, 127
      %s181 = smul.addr %s180, 4
      %s182 = scalar_lea.vmem %s2, %s181
      %s183 = smul.u32 32, %s15
      %p184 = scmp.lt.s32.totalorder %s15, 3
      %s185 = scalar_select %p184, %s15, 3
      %s186 = smul.addr %s185, 8
      %s187 = scalar_lea.vmem %s3, %s186
      %v189 = vld [vmem:[%s176] sm:$0xff]
      %v190 = vld [vmem:[%s176 + $0x8] sm:$0xff]
      %v191 = vld [vmem:[%s176 + $0x10] sm:$0xff]
      %v192 = vld [vmem:[%s176 + $0x18] sm:$0xff]
      %v193 = vld [vmem:[%s176 + $0x20] sm:$0xff]
      %v194 = vld [vmem:[%s176 + $0x28] sm:$0xff]
      %v195 = vld [vmem:[%s176 + $0x30] sm:$0xff]
      %v196 = vld [vmem:[%s176 + $0x38] sm:$0xff]
      %v197 = vld [vmem:[%s176 + $0x40] sm:$0xff]
      %v198 = vld [vmem:[%s176 + $0x48] sm:$0xff]
      %v199 = vld [vmem:[%s176 + $0x50] sm:$0xff]
      %v200 = vld [vmem:[%s176 + $0x58] sm:$0xff]
      %v201 = vld [vmem:[%s176 + $0x60] sm:$0xff]
      %v202 = vld [vmem:[%s176 + $0x68] sm:$0xff]
      %v203 = vld [vmem:[%s176 + $0x70] sm:$0xff]
      %v204 = vld [vmem:[%s176 + $0x78] sm:$0xff]
      %v205 = vld [vmem:[%s176 + $0x80] sm:$0xff]
      %v206 = vld [vmem:[%s176 + $0x88] sm:$0xff]
      %v207 = vld [vmem:[%s176 + $0x90] sm:$0xff]
      %v208 = vld [vmem:[%s176 + $0x98] sm:$0xff]
      %v209 = vld [vmem:[%s176 + $0xa0] sm:$0xff]
      %v210 = vld [vmem:[%s176 + $0xa8] sm:$0xff]
      %v211 = vld [vmem:[%s176 + $0xb0] sm:$0xff]
      %v212 = vld [vmem:[%s176 + $0xb8] sm:$0xff]
      %v213 = vld [vmem:[%s176 + $0xc0] sm:$0xff]
      %v214 = vld [vmem:[%s176 + $0xc8] sm:$0xff]
      %v215 = vld [vmem:[%s176 + $0xd0] sm:$0xff]
      %v216 = vld [vmem:[%s176 + $0xd8] sm:$0xff]
      %v217 = vld [vmem:[%s176 + $0xe0] sm:$0xff]
      %v218 = vld [vmem:[%s176 + $0xe8] sm:$0xff]
      %v219 = vld [vmem:[%s176 + $0xf0] sm:$0xff]
      %v220 = vld [vmem:[%s176 + $0xf8] sm:$0xff]
      %v221 = vld [vmem:[%s176 + $0x100] sm:$0xff]
      %v222 = vld [vmem:[%s176 + $0x108] sm:$0xff]
      %v223 = vld [vmem:[%s176 + $0x110] sm:$0xff]
      %v224 = vld [vmem:[%s176 + $0x118] sm:$0xff]
      %v225 = vld [vmem:[%s176 + $0x120] sm:$0xff]
      %v226 = vld [vmem:[%s176 + $0x128] sm:$0xff]
      %v227 = vld [vmem:[%s176 + $0x130] sm:$0xff]
      %v228 = vld [vmem:[%s176 + $0x138] sm:$0xff]
      %v229 = vld [vmem:[%s176 + $0x140] sm:$0xff]
      %v230 = vld [vmem:[%s176 + $0x148] sm:$0xff]
      %v231 = vld [vmem:[%s176 + $0x150] sm:$0xff]
      %v232 = vld [vmem:[%s176 + $0x158] sm:$0xff]
      %v233 = vld [vmem:[%s176 + $0x160] sm:$0xff]
      %v234 = vld [vmem:[%s176 + $0x168] sm:$0xff]
      %v235 = vld [vmem:[%s176 + $0x170] sm:$0xff]
      %v236 = vld [vmem:[%s176 + $0x178] sm:$0xff]
      %v237 = vld [vmem:[%s176 + $0x180] sm:$0xff]
      %v238 = vld [vmem:[%s176 + $0x188] sm:$0xff]
      %v239 = vld [vmem:[%s176 + $0x190] sm:$0xff]
      %v240 = vld [vmem:[%s176 + $0x198] sm:$0xff]
      %v241 = vld [vmem:[%s176 + $0x1a0] sm:$0xff]
      %v242 = vld [vmem:[%s176 + $0x1a8] sm:$0xff]
      %v243 = vld [vmem:[%s176 + $0x1b0] sm:$0xff]
      %v244 = vld [vmem:[%s176 + $0x1b8] sm:$0xff]
      %v245 = vld [vmem:[%s176 + $0x1c0] sm:$0xff]
      %v246 = vld [vmem:[%s176 + $0x1c8] sm:$0xff]
      %v247 = vld [vmem:[%s176 + $0x1d0] sm:$0xff]
      %v248 = vld [vmem:[%s176 + $0x1d8] sm:$0xff]
      %v249 = vld [vmem:[%s176 + $0x1e0] sm:$0xff]
      %v250 = vld [vmem:[%s176 + $0x1e8] sm:$0xff]
      %v251 = vld [vmem:[%s176 + $0x1f0] sm:$0xff]
      %v252 = vld [vmem:[%s176 + $0x1f8] sm:$0xff]
      %v253 = vld [vmem:[%s1] sm:$0xf]
      %v254 = vld [vmem:[%s1 + $0x4] sm:$0xf]
      %v255 = vld [vmem:[%s1 + $0x8] sm:$0xf]
      %v256 = vld [vmem:[%s1 + $0xc] sm:$0xf]
      %v257 = vld [vmem:[%s1 + $0x10] sm:$0xf]
      %v258 = vld [vmem:[%s1 + $0x14] sm:$0xf]
      %v259 = vld [vmem:[%s1 + $0x18] sm:$0xf]
      %v260 = vld [vmem:[%s1 + $0x1c] sm:$0xf]
      %v261 = vld [vmem:[%s1 + $0x20] sm:$0xf]
      %v262 = vld [vmem:[%s1 + $0x24] sm:$0xf]
      %v263 = vld [vmem:[%s1 + $0x28] sm:$0xf]
      %v264 = vld [vmem:[%s1 + $0x2c] sm:$0xf]
      %v265 = vld [vmem:[%s1 + $0x30] sm:$0xf]
      %v266 = vld [vmem:[%s1 + $0x34] sm:$0xf]
      %v267 = vld [vmem:[%s1 + $0x38] sm:$0xf]
      %v268 = vld [vmem:[%s1 + $0x3c] sm:$0xf]
      %v269 = vld [vmem:[%s1 + $0x40] sm:$0xf]
      %v270 = vld [vmem:[%s1 + $0x44] sm:$0xf]
      %v271 = vld [vmem:[%s1 + $0x48] sm:$0xf]
      %v272 = vld [vmem:[%s1 + $0x4c] sm:$0xf]
      %v273 = vld [vmem:[%s1 + $0x50] sm:$0xf]
      %v274 = vld [vmem:[%s1 + $0x54] sm:$0xf]
      %v275 = vld [vmem:[%s1 + $0x58] sm:$0xf]
      %v276 = vld [vmem:[%s1 + $0x5c] sm:$0xf]
      %v277 = vld [vmem:[%s1 + $0x60] sm:$0xf]
      %v278 = vld [vmem:[%s1 + $0x64] sm:$0xf]
      %v279 = vld [vmem:[%s1 + $0x68] sm:$0xf]
      %v280 = vld [vmem:[%s1 + $0x6c] sm:$0xf]
      %v281 = vld [vmem:[%s1 + $0x70] sm:$0xf]
      %v282 = vld [vmem:[%s1 + $0x74] sm:$0xf]
      %v283 = vld [vmem:[%s1 + $0x78] sm:$0xf]
      %v284 = vld [vmem:[%s1 + $0x7c] sm:$0xf]
      %v285 = vld [vmem:[%s1 + $0x80] sm:$0xf]
      %v286 = vld [vmem:[%s1 + $0x84] sm:$0xf]
      %v287 = vld [vmem:[%s1 + $0x88] sm:$0xf]
      %v288 = vld [vmem:[%s1 + $0x8c] sm:$0xf]
      %v289 = vld [vmem:[%s1 + $0x90] sm:$0xf]
      %v290 = vld [vmem:[%s1 + $0x94] sm:$0xf]
      %v291 = vld [vmem:[%s1 + $0x98] sm:$0xf]
      %v292 = vld [vmem:[%s1 + $0x9c] sm:$0xf]
      %v293 = vld [vmem:[%s1 + $0xa0] sm:$0xf]
      %v294 = vld [vmem:[%s1 + $0xa4] sm:$0xf]
      %v295 = vld [vmem:[%s1 + $0xa8] sm:$0xf]
      %v296 = vld [vmem:[%s1 + $0xac] sm:$0xf]
      %v297 = vld [vmem:[%s1 + $0xb0] sm:$0xf]
      %v298 = vld [vmem:[%s1 + $0xb4] sm:$0xf]
      %v299 = vld [vmem:[%s1 + $0xb8] sm:$0xf]
      %v300 = vld [vmem:[%s1 + $0xbc] sm:$0xf]
      %v301 = vld [vmem:[%s1 + $0xc0] sm:$0xf]
      %v302 = vld [vmem:[%s1 + $0xc4] sm:$0xf]
      %v303 = vld [vmem:[%s1 + $0xc8] sm:$0xf]
      %v304 = vld [vmem:[%s1 + $0xcc] sm:$0xf]
      %v305 = vld [vmem:[%s1 + $0xd0] sm:$0xf]
      %v306 = vld [vmem:[%s1 + $0xd4] sm:$0xf]
      %v371 = vunpack.c.l.b16 %v189
      %v372 = vunpack.c.h.b16 %v189
      %v373 = vunpack.c.l.b16 %v190
      %v374 = vunpack.c.h.b16 %v190
      %v375 = vunpack.c.l.b16 %v191
      %v376 = vunpack.c.h.b16 %v191
      %v377 = vunpack.c.l.b16 %v192
      %v378 = vunpack.c.h.b16 %v192
      %v379 = vunpack.c.l.b16 %v193
      %v380 = vunpack.c.h.b16 %v193
      %v381 = vunpack.c.l.b16 %v194
      %v382 = vunpack.c.h.b16 %v194
      %v383 = vunpack.c.l.b16 %v195
      %v384 = vunpack.c.h.b16 %v195
      %v385 = vunpack.c.l.b16 %v196
      %v386 = vunpack.c.h.b16 %v196
      %v387 = vunpack.c.l.b16 %v197
      %v388 = vunpack.c.h.b16 %v197
      %v389 = vunpack.c.l.b16 %v198
      %v390 = vunpack.c.h.b16 %v198
      %v391 = vunpack.c.l.b16 %v199
      %v392 = vunpack.c.h.b16 %v199
      %v393 = vunpack.c.l.b16 %v200
      %v394 = vunpack.c.h.b16 %v200
      %v395 = vunpack.c.l.b16 %v201
      %v396 = vunpack.c.h.b16 %v201
      %v397 = vunpack.c.l.b16 %v202
      %v398 = vunpack.c.h.b16 %v202
      %v399 = vunpack.c.l.b16 %v203
      %v400 = vunpack.c.h.b16 %v203
      %v401 = vunpack.c.l.b16 %v204
      %v402 = vunpack.c.h.b16 %v204
      %v403 = vunpack.c.l.b16 %v205
      %v404 = vunpack.c.h.b16 %v205
      %v405 = vunpack.c.l.b16 %v206
      %v406 = vunpack.c.h.b16 %v206
      %v407 = vunpack.c.l.b16 %v207
      %v408 = vunpack.c.h.b16 %v207
      %v409 = vunpack.c.l.b16 %v208
      %v410 = vunpack.c.h.b16 %v208
      %v411 = vunpack.c.l.b16 %v209
      %v412 = vunpack.c.h.b16 %v209
      %v413 = vunpack.c.l.b16 %v210
      %v414 = vunpack.c.h.b16 %v210
      %v415 = vunpack.c.l.b16 %v211
      %v416 = vunpack.c.h.b16 %v211
      %v417 = vunpack.c.l.b16 %v212
      %v418 = vunpack.c.h.b16 %v212
      %v419 = vunpack.c.l.b16 %v213
      %v420 = vunpack.c.h.b16 %v213
      %v421 = vunpack.c.l.b16 %v214
      %v422 = vunpack.c.h.b16 %v214
      %v423 = vunpack.c.l.b16 %v215
      %v424 = vunpack.c.h.b16 %v215
      %v425 = vunpack.c.l.b16 %v216
      %v426 = vunpack.c.h.b16 %v216
      %v427 = vunpack.c.l.b16 %v217
      %v428 = vunpack.c.h.b16 %v217
      %v429 = vunpack.c.l.b16 %v218
      %v430 = vunpack.c.h.b16 %v218
      %v431 = vunpack.c.l.b16 %v219
      %v432 = vunpack.c.h.b16 %v219
      %v433 = vunpack.c.l.b16 %v220
      %v434 = vunpack.c.h.b16 %v220
      %v435 = vunpack.c.l.b16 %v221
      %v436 = vunpack.c.h.b16 %v221
      %v437 = vunpack.c.l.b16 %v222
      %v438 = vunpack.c.h.b16 %v222
      %v439 = vunpack.c.l.b16 %v223
      %v440 = vunpack.c.h.b16 %v223
      %v441 = vunpack.c.l.b16 %v224
      %v442 = vunpack.c.h.b16 %v224
      %v443 = vunpack.c.l.b16 %v225
      %v444 = vunpack.c.h.b16 %v225
      %v445 = vunpack.c.l.b16 %v226
      %v446 = vunpack.c.h.b16 %v226
      %v447 = vunpack.c.l.b16 %v227
      %v448 = vunpack.c.h.b16 %v227
      %v449 = vunpack.c.l.b16 %v228
      %v450 = vunpack.c.h.b16 %v228
      %v451 = vunpack.c.l.b16 %v229
      %v452 = vunpack.c.h.b16 %v229
      %v453 = vunpack.c.l.b16 %v230
      %v454 = vunpack.c.h.b16 %v230
      %v455 = vunpack.c.l.b16 %v231
      %v456 = vunpack.c.h.b16 %v231
      %v457 = vunpack.c.l.b16 %v232
      %v458 = vunpack.c.h.b16 %v232
      %v459 = vunpack.c.l.b16 %v233
      %v460 = vunpack.c.h.b16 %v233
      %v461 = vunpack.c.l.b16 %v234
      %v462 = vunpack.c.h.b16 %v234
      %v463 = vunpack.c.l.b16 %v235
      %v464 = vunpack.c.h.b16 %v235
      %v465 = vunpack.c.l.b16 %v236
      %v466 = vunpack.c.h.b16 %v236
      %v467 = vunpack.c.l.b16 %v237
      %v468 = vunpack.c.h.b16 %v237
      %v469 = vunpack.c.l.b16 %v238
      %v470 = vunpack.c.h.b16 %v238
      %v471 = vunpack.c.l.b16 %v239
      %v472 = vunpack.c.h.b16 %v239
      %v473 = vunpack.c.l.b16 %v240
      %v474 = vunpack.c.h.b16 %v240
      %v475 = vunpack.c.l.b16 %v241
      %v476 = vunpack.c.h.b16 %v241
      %v477 = vunpack.c.l.b16 %v242
      %v478 = vunpack.c.h.b16 %v242
      %v479 = vunpack.c.l.b16 %v243
      %v480 = vunpack.c.h.b16 %v243
      %v481 = vunpack.c.l.b16 %v244
      %v482 = vunpack.c.h.b16 %v244
      %v483 = vunpack.c.l.b16 %v245
      %v484 = vunpack.c.h.b16 %v245
      %v485 = vunpack.c.l.b16 %v246
      %v486 = vunpack.c.h.b16 %v246
      %v487 = vunpack.c.l.b16 %v247
      %v488 = vunpack.c.h.b16 %v247
      %v489 = vunpack.c.l.b16 %v248
      %v490 = vunpack.c.h.b16 %v248
      %v491 = vunpack.c.l.b16 %v249
      %v492 = vunpack.c.h.b16 %v249
      %v493 = vunpack.c.l.b16 %v250
      %v494 = vunpack.c.h.b16 %v250
      %v495 = vunpack.c.l.b16 %v251
      %v496 = vunpack.c.h.b16 %v251
      %v497 = vunpack.c.l.b16 %v252
      %v498 = vunpack.c.h.b16 %v252
      %v499 = vpack.c.b16 %v375, %v371
      %v500 = vpack.c.b16 %v376, %v372
      %v501 = vpack.c.b16 %v377, %v373
      %v502 = vpack.c.b16 %v378, %v374
      %v503 = vpack.c.b16 %v383, %v379
      %v504 = vpack.c.b16 %v384, %v380
      %v505 = vpack.c.b16 %v385, %v381
      %v506 = vpack.c.b16 %v386, %v382
      %v507 = vpack.c.b16 %v391, %v387
      %v508 = vpack.c.b16 %v392, %v388
      %v509 = vpack.c.b16 %v393, %v389
      %v510 = vpack.c.b16 %v394, %v390
      %v511 = vpack.c.b16 %v399, %v395
      %v512 = vpack.c.b16 %v400, %v396
      %v513 = vpack.c.b16 %v401, %v397
      %v514 = vpack.c.b16 %v402, %v398
      %v515 = vpack.c.b16 %v407, %v403
      %v516 = vpack.c.b16 %v408, %v404
      %v517 = vpack.c.b16 %v409, %v405
      %v518 = vpack.c.b16 %v410, %v406
      %v519 = vpack.c.b16 %v415, %v411
      %v520 = vpack.c.b16 %v416, %v412
      %v521 = vpack.c.b16 %v417, %v413
      %v522 = vpack.c.b16 %v418, %v414
      %v523 = vpack.c.b16 %v423, %v419
      %v524 = vpack.c.b16 %v424, %v420
      %v525 = vpack.c.b16 %v425, %v421
      %v526 = vpack.c.b16 %v426, %v422
      %v527 = vpack.c.b16 %v431, %v427
      %v528 = vpack.c.b16 %v432, %v428
      %v529 = vpack.c.b16 %v433, %v429
      %v530 = vpack.c.b16 %v434, %v430
      %v531 = vpack.c.b16 %v439, %v435
      %v532 = vpack.c.b16 %v440, %v436
      %v533 = vpack.c.b16 %v441, %v437
      %v534 = vpack.c.b16 %v442, %v438
      %v535 = vpack.c.b16 %v447, %v443
      %v536 = vpack.c.b16 %v448, %v444
      %v537 = vpack.c.b16 %v449, %v445
      %v538 = vpack.c.b16 %v450, %v446
      %v539 = vpack.c.b16 %v455, %v451
      %v540 = vpack.c.b16 %v456, %v452
      %v541 = vpack.c.b16 %v457, %v453
      %v542 = vpack.c.b16 %v458, %v454
      %v543 = vpack.c.b16 %v463, %v459
      %v544 = vpack.c.b16 %v464, %v460
      %v545 = vpack.c.b16 %v465, %v461
      %v546 = vpack.c.b16 %v466, %v462
      %v547 = vpack.c.b16 %v471, %v467
      %v548 = vpack.c.b16 %v472, %v468
      %v549 = vpack.c.b16 %v473, %v469
      %v550 = vpack.c.b16 %v474, %v470
      %v551 = vpack.c.b16 %v479, %v475
      %v552 = vpack.c.b16 %v480, %v476
      %v553 = vpack.c.b16 %v481, %v477
      %v554 = vpack.c.b16 %v482, %v478
      %v555 = vpack.c.b16 %v487, %v483
      %v556 = vpack.c.b16 %v488, %v484
      %v557 = vpack.c.b16 %v489, %v485
      %v558 = vpack.c.b16 %v490, %v486
      %v559 = vpack.c.b16 %v495, %v491
      %v560 = vpack.c.b16 %v496, %v492
      %v561 = vpack.c.b16 %v497, %v493
      %v562 = vpack.c.b16 %v498, %v494
      %v665 = vunpack.c.l.b16 %v253
      %v666 = vunpack.c.l.b16 %v254
      %v667 = vunpack.c.l.b16 %v255
      %v668 = vunpack.c.l.b16 %v256
      %v669 = vunpack.c.l.b16 %v257
      %v670 = vunpack.c.l.b16 %v258
      %v671 = vunpack.c.l.b16 %v259
      %v672 = vunpack.c.l.b16 %v260
      %v673 = vunpack.c.l.b16 %v261
      %v674 = vunpack.c.l.b16 %v262
      %v675 = vunpack.c.l.b16 %v263
      %v676 = vunpack.c.l.b16 %v264
      %v677 = vunpack.c.l.b16 %v265
      %v678 = vunpack.c.l.b16 %v266
      %v679 = vunpack.c.l.b16 %v267
      %v680 = vunpack.c.l.b16 %v268
      %v681 = vunpack.c.l.b16 %v269
      %v682 = vunpack.c.l.b16 %v270
      %v683 = vunpack.c.l.b16 %v271
      %v684 = vunpack.c.l.b16 %v272
      %v685 = vunpack.c.l.b16 %v273
      %v686 = vunpack.c.l.b16 %v274
      %v687 = vunpack.c.l.b16 %v275
      %v688 = vunpack.c.l.b16 %v276
      %v689 = vunpack.c.l.b16 %v277
      %v690 = vunpack.c.l.b16 %v278
      %v691 = vunpack.c.l.b16 %v279
      %v692 = vunpack.c.l.b16 %v280
      %v693 = vunpack.c.l.b16 %v281
      %v694 = vunpack.c.l.b16 %v282
      %v695 = vunpack.c.l.b16 %v283
      %v696 = vunpack.c.l.b16 %v284
      %v697 = vunpack.c.l.b16 %v285
      %v698 = vunpack.c.l.b16 %v286
      %v699 = vunpack.c.l.b16 %v287
      %v700 = vunpack.c.l.b16 %v288
      %v701 = vunpack.c.l.b16 %v289
      %v702 = vunpack.c.l.b16 %v290
      %v703 = vunpack.c.l.b16 %v291
      %v704 = vunpack.c.l.b16 %v292
      %v705 = vunpack.c.l.b16 %v293
      %v706 = vunpack.c.l.b16 %v294
      %v707 = vunpack.c.l.b16 %v295
      %v708 = vunpack.c.l.b16 %v296
      %v709 = vunpack.c.l.b16 %v297
      %v710 = vunpack.c.l.b16 %v298
      %v711 = vunpack.c.l.b16 %v299
      %v712 = vunpack.c.l.b16 %v300
      %v713 = vunpack.c.l.b16 %v301
      %v714 = vunpack.c.l.b16 %v302
      %v715 = vunpack.c.l.b16 %v303
      %v716 = vunpack.c.l.b16 %v304
      %v717 = vunpack.c.l.b16 %v305
      %v718 = vunpack.c.l.b16 %v306
      %v719 = vpack.c.b16 %v666, %v665
      %v720 = vpack.c.b16 %v668, %v667
      %v721 = vpack.c.b16 %v670, %v669
      %v722 = vpack.c.b16 %v672, %v671
      %v723 = vpack.c.b16 %v674, %v673
      %v724 = vpack.c.b16 %v676, %v675
      %v725 = vpack.c.b16 %v678, %v677
      %v726 = vpack.c.b16 %v680, %v679
      %v727 = vpack.c.b16 %v682, %v681
      %v728 = vpack.c.b16 %v684, %v683
      %v729 = vpack.c.b16 %v686, %v685
      %v730 = vpack.c.b16 %v688, %v687
      %v731 = vpack.c.b16 %v690, %v689
      %v732 = vpack.c.b16 %v692, %v691
      %v733 = vpack.c.b16 %v694, %v693
      %v734 = vpack.c.b16 %v696, %v695
      %v735 = vpack.c.b16 %v698, %v697
      %v736 = vpack.c.b16 %v700, %v699
      %v737 = vpack.c.b16 %v702, %v701
      %v738 = vpack.c.b16 %v704, %v703
      %v739 = vpack.c.b16 %v706, %v705
      %v740 = vpack.c.b16 %v708, %v707
      %v741 = vpack.c.b16 %v710, %v709
      %v742 = vpack.c.b16 %v712, %v711
      %v743 = vpack.c.b16 %v714, %v713
      %v744 = vpack.c.b16 %v716, %v715
      %v745 = vpack.c.b16 %v718, %v717
      %vm773 = vcmask 392192
      %v775 = vsel %vm773, %v502, 0
      %v778 = vsel %vm773, %v506, 0
      %v781 = vsel %vm773, %v510, 0
      %v784 = vsel %vm773, %v514, 0
      %v787 = vsel %vm773, %v518, 0
      %v790 = vsel %vm773, %v522, 0
      %v793 = vsel %vm773, %v526, 0
      %v796 = vsel %vm773, %v530, 0
      %v799 = vsel %vm773, %v534, 0
      %v802 = vsel %vm773, %v538, 0
      %v805 = vsel %vm773, %v542, 0
      %v808 = vsel %vm773, %v546, 0
      %v811 = vsel %vm773, %v550, 0
      %v814 = vsel %vm773, %v554, 0
      %v817 = vsel %vm773, %v558, 0
      %v820 = vsel %vm773, %v562, 0
      %822 = vmatprep.subr.bf16.mxu0 0
      %823 = vmatpush1.bf16.msra.mxu0 %v719
      %824 = vmatprep.subr.bf16.mxu0 0
      %825 = vmatpush1.bf16.msra.mxu0 %v720
      %826 = vmatprep.subr.bf16.mxu0 0
      %827 = vmatpush1.bf16.msra.mxu0 %v721
      %828 = vmatprep.subr.bf16.mxu0 0
      %829 = vmatpush1.bf16.msra.mxu0 %v722
      %830 = vmatprep.subr.bf16.mxu0 0
      %831 = vmatpush1.bf16.msra.mxu0 %v723
      %832 = vmatprep.subr.bf16.mxu0 0
      %833 = vmatpush1.bf16.msra.mxu0 %v724
      %834 = vmatprep.subr.bf16.mxu0 0
      %835 = vmatpush1.bf16.msra.mxu0 %v725
      %836 = vmatprep.subr.bf16.mxu0 0
      %837 = vmatpush1.bf16.msra.mxu0 %v726
      %838 = vmatprep.subr.bf16.mxu0 0
      %839 = vmatpush1.bf16.msra.mxu0 %v727
      %840 = vmatprep.subr.bf16.mxu0 0
      %841 = vmatpush1.bf16.msra.mxu0 %v728
      %842 = vmatprep.subr.bf16.mxu0 0
      %843 = vmatpush1.bf16.msra.mxu0 %v729
      %844 = vmatprep.subr.bf16.mxu0 0
      %845 = vmatpush1.bf16.msra.mxu0 %v730
      %846 = vmatprep.subr.bf16.mxu0 0
      %847 = vmatpush1.bf16.msra.mxu0 %v731
      %848 = vmatprep.subr.bf16.mxu0 0
      %849 = vmatpush1.bf16.msra.mxu0 %v732
      %850 = vmatprep.subr.bf16.mxu0 0
      %851 = vmatpush1.bf16.msra.mxu0 %v733
      %852 = vmatprep.subr.bf16.mxu0 0
      %853 = vmatpush1.bf16.msra.mxu0 %v734
      %854 = vmatprep.mubr.bf16.mxu0 %v500
      %855 = vmatmul.mubr.bf16.gmra.mrb[0].mxu0 %v499
      %v856 = vpop.f32.mrb[0].mxu0
      %v857 = vadd.f32 0.0, %v856
      %v858 = vpop.f32.mrb[0].mxu0
      %v859 = vpop.f32.mrb[0].mxu0
      %v860 = vadd.f32 0.0, %v859
      %v861 = vpop.f32.mrb[0].mxu0
      %862 = vmatprep.mubr.bf16.mxu0 %v504
      %863 = vmatmul.mubr.bf16.gmra.mrb[0].mxu0 %v503
      %v864 = vpop.f32.mrb[0].mxu0
      %v865 = vadd.f32 0.0, %v864
      %v866 = vpop.f32.mrb[0].mxu0
      %v867 = vpop.f32.mrb[0].mxu0
      %v868 = vadd.f32 0.0, %v867
      %v869 = vpop.f32.mrb[0].mxu0
      %870 = vmatprep.mubr.bf16.mxu0 %v508
      %871 = vmatmul.mubr.bf16.gmra.mrb[0].mxu0 %v507
      %v872 = vpop.f32.mrb[0].mxu0
      %v873 = vadd.f32 0.0, %v872
      %v874 = vpop.f32.mrb[0].mxu0
      %v875 = vpop.f32.mrb[0].mxu0
      %v876 = vadd.f32 0.0, %v875
      %v877 = vpop.f32.mrb[0].mxu0
      %878 = vmatprep.mubr.bf16.mxu0 %v512
      %879 = vmatmul.mubr.bf16.gmra.mrb[0].mxu0 %v511
      %v880 = vpop.f32.mrb[0].mxu0
      %v881 = vadd.f32 0.0, %v880
      %v882 = vpop.f32.mrb[0].mxu0
      %v883 = vpop.f32.mrb[0].mxu0
      %v884 = vadd.f32 0.0, %v883
      %v885 = vpop.f32.mrb[0].mxu0
      %886 = vmatprep.mubr.bf16.mxu0 %v516
      %887 = vmatmul.mubr.bf16.gmra.mrb[0].mxu0 %v515
      %v888 = vpop.f32.mrb[0].mxu0
      %v889 = vadd.f32 0.0, %v888
      %v890 = vpop.f32.mrb[0].mxu0
      %v891 = vpop.f32.mrb[0].mxu0
      %v892 = vadd.f32 0.0, %v891
      %v893 = vpop.f32.mrb[0].mxu0
      %894 = vmatprep.mubr.bf16.mxu0 %v520
      %895 = vmatmul.mubr.bf16.gmra.mrb[0].mxu0 %v519
      %v896 = vpop.f32.mrb[0].mxu0
      %v897 = vadd.f32 0.0, %v896
      %v898 = vpop.f32.mrb[0].mxu0
      %v899 = vpop.f32.mrb[0].mxu0
      %v900 = vadd.f32 0.0, %v899
      %v901 = vpop.f32.mrb[0].mxu0
      %902 = vmatprep.mubr.bf16.mxu0 %v524
      %903 = vmatmul.mubr.bf16.gmra.mrb[0].mxu0 %v523
      %v904 = vpop.f32.mrb[0].mxu0
      %v905 = vadd.f32 0.0, %v904
      %v906 = vpop.f32.mrb[0].mxu0
      %v907 = vpop.f32.mrb[0].mxu0
      %v908 = vadd.f32 0.0, %v907
      %v909 = vpop.f32.mrb[0].mxu0
      %910 = vmatprep.mubr.bf16.mxu0 %v528
      %911 = vmatmul.mubr.bf16.gmra.mrb[0].mxu0 %v527
      %v912 = vpop.f32.mrb[0].mxu0
      %v913 = vadd.f32 0.0, %v912
      %v914 = vpop.f32.mrb[0].mxu0
      %v915 = vpop.f32.mrb[0].mxu0
      %v916 = vadd.f32 0.0, %v915
      %v917 = vpop.f32.mrb[0].mxu0
      %918 = vmatprep.mubr.bf16.mxu0 %v532
      %919 = vmatmul.mubr.bf16.gmra.mrb[0].mxu0 %v531
      %v920 = vpop.f32.mrb[0].mxu0
      %v921 = vadd.f32 0.0, %v920
      %v922 = vpop.f32.mrb[0].mxu0
      %v923 = vpop.f32.mrb[0].mxu0
      %v924 = vadd.f32 0.0, %v923
      %v925 = vpop.f32.mrb[0].mxu0
      %926 = vmatprep.mubr.bf16.mxu0 %v536
      %927 = vmatmul.mubr.bf16.gmra.mrb[0].mxu0 %v535
      %v928 = vpop.f32.mrb[0].mxu0
      %v929 = vadd.f32 0.0, %v928
      %v930 = vpop.f32.mrb[0].mxu0
      %v931 = vpop.f32.mrb[0].mxu0
      %v932 = vadd.f32 0.0, %v931
      %v933 = vpop.f32.mrb[0].mxu0
      %934 = vmatprep.mubr.bf16.mxu0 %v540
      %935 = vmatmul.mubr.bf16.gmra.mrb[0].mxu0 %v539
      %v936 = vpop.f32.mrb[0].mxu0
      %v937 = vadd.f32 0.0, %v936
      %v938 = vpop.f32.mrb[0].mxu0
      %v939 = vpop.f32.mrb[0].mxu0
      %v940 = vadd.f32 0.0, %v939
      %v941 = vpop.f32.mrb[0].mxu0
      %942 = vmatprep.mubr.bf16.mxu0 %v544
      %943 = vmatmul.mubr.bf16.gmra.mrb[0].mxu0 %v543
      %v944 = vpop.f32.mrb[0].mxu0
      %v945 = vadd.f32 0.0, %v944
      %v946 = vpop.f32.mrb[0].mxu0
      %v947 = vpop.f32.mrb[0].mxu0
      %v948 = vadd.f32 0.0, %v947
      %v949 = vpop.f32.mrb[0].mxu0
      %950 = vmatprep.mubr.bf16.mxu0 %v548
      %951 = vmatmul.mubr.bf16.gmra.mrb[0].mxu0 %v547
      %v952 = vpop.f32.mrb[0].mxu0
      %v953 = vadd.f32 0.0, %v952
      %v954 = vpop.f32.mrb[0].mxu0
      %v955 = vpop.f32.mrb[0].mxu0
      %v956 = vadd.f32 0.0, %v955
      %v957 = vpop.f32.mrb[0].mxu0
      %958 = vmatprep.mubr.bf16.mxu0 %v552
      %959 = vmatmul.mubr.bf16.gmra.mrb[0].mxu0 %v551
      %v960 = vpop.f32.mrb[0].mxu0
      %v961 = vadd.f32 0.0, %v960
      %v962 = vpop.f32.mrb[0].mxu0
      %v963 = vpop.f32.mrb[0].mxu0
      %v964 = vadd.f32 0.0, %v963
      %v965 = vpop.f32.mrb[0].mxu0
      %966 = vmatprep.mubr.bf16.mxu0 %v556
      %967 = vmatmul.mubr.bf16.gmra.mrb[0].mxu0 %v555
      %v968 = vpop.f32.mrb[0].mxu0
      %v969 = vadd.f32 0.0, %v968
      %v970 = vpop.f32.mrb[0].mxu0
      %v971 = vpop.f32.mrb[0].mxu0
      %v972 = vadd.f32 0.0, %v971
      %v973 = vpop.f32.mrb[0].mxu0
      %974 = vmatprep.mubr.bf16.mxu0 %v560
      %975 = vmatmul.mubr.bf16.gmra.mrb[0].mxu0 %v559
      %v976 = vpop.f32.mrb[0].mxu0
      %v977 = vadd.f32 0.0, %v976
      %v978 = vpop.f32.mrb[0].mxu0
      %v979 = vpop.f32.mrb[0].mxu0
      %v980 = vadd.f32 0.0, %v979
      %v981 = vpop.f32.mrb[0].mxu0
      %982 = vdwg.mxu0
      %983 = vmatprep.subr.bf16.mxu0 0
      %984 = vmatpush1.bf16.msra.mxu0 %v735
      %985 = vmatprep.subr.bf16.mxu0 0
      %986 = vmatpush1.bf16.msra.mxu0 %v736
      %987 = vmatprep.subr.bf16.mxu0 0
      %988 = vmatpush1.bf16.msra.mxu0 %v737
      %989 = vmatprep.subr.bf16.mxu0 0
      %990 = vmatpush1.bf16.msra.mxu0 %v738
      %991 = vmatprep.subr.bf16.mxu0 0
      %992 = vmatpush1.bf16.msra.mxu0 %v739
      %993 = vmatprep.subr.bf16.mxu0 0
      %994 = vmatpush1.bf16.msra.mxu0 %v740
      %995 = vmatprep.subr.bf16.mxu0 0
      %996 = vmatpush1.bf16.msra.mxu0 %v741
      %997 = vmatprep.subr.bf16.mxu0 0
      %998 = vmatpush1.bf16.msra.mxu0 %v742
      %999 = vmatprep.subr.bf16.mxu0 0
      %1000 = vmatpush1.bf16.msra.mxu0 %v743
      %1001 = vmatprep.subr.bf16.mxu0 0
      %1002 = vmatpush1.bf16.msra.mxu0 %v744
      %1003 = vmatprep.subr.bf16.mxu0 0
      %1004 = vmatpush1.bf16.msra.mxu0 %v745
      %1005 = vmatprep.subr.bf16.mxu0 0
      %1006 = vmatpush1.bf16.msra.mxu0 0
      %1007 = vmatprep.subr.bf16.mxu0 0
      %1008 = vmatpush1.bf16.msra.mxu0 0
      %1009 = vmatprep.subr.bf16.mxu0 0
      %1010 = vmatpush1.bf16.msra.mxu0 0
      %1011 = vmatprep.subr.bf16.mxu0 0
      %1012 = vmatpush1.bf16.msra.mxu0 0
      %1013 = vmatprep.subr.bf16.mxu0 0
      %1014 = vmatpush1.bf16.msra.mxu0 0
      %1015 = vmatprep.mubr.bf16.mxu0 %v775
      %1016 = vmatmul.mubr.bf16.gmra.mrb[0].mxu0 %v501
      %v1017 = vpop.f32.mrb[0].mxu0
      %v1018 = vadd.f32 %v857, %v1017
      %v1019 = vpop.f32.mrb[0].mxu0
      %v1020 = vpop.f32.mrb[0].mxu0
      %v1021 = vadd.f32 %v860, %v1020
      %v1022 = vpop.f32.mrb[0].mxu0
      %1023 = vmatprep.mubr.bf16.mxu0 %v778
      %1024 = vmatmul.mubr.bf16.gmra.mrb[0].mxu0 %v505
      %v1025 = vpop.f32.mrb[0].mxu0
      %v1026 = vadd.f32 %v865, %v1025
      %v1027 = vpop.f32.mrb[0].mxu0
      %v1028 = vpop.f32.mrb[0].mxu0
      %v1029 = vadd.f32 %v868, %v1028
      %v1030 = vpop.f32.mrb[0].mxu0
      %1031 = vmatprep.mubr.bf16.mxu0 %v781
      %1032 = vmatmul.mubr.bf16.gmra.mrb[0].mxu0 %v509
      %v1033 = vpop.f32.mrb[0].mxu0
      %v1034 = vadd.f32 %v873, %v1033
      %v1035 = vpop.f32.mrb[0].mxu0
      %v1036 = vpop.f32.mrb[0].mxu0
      %v1037 = vadd.f32 %v876, %v1036
      %v1038 = vpop.f32.mrb[0].mxu0
      %1039 = vmatprep.mubr.bf16.mxu0 %v784
      %1040 = vmatmul.mubr.bf16.gmra.mrb[0].mxu0 %v513
      %v1041 = vpop.f32.mrb[0].mxu0
      %v1042 = vadd.f32 %v881, %v1041
      %v1043 = vpop.f32.mrb[0].mxu0
      %v1044 = vpop.f32.mrb[0].mxu0
      %v1045 = vadd.f32 %v884, %v1044
      %v1046 = vpop.f32.mrb[0].mxu0
      %1047 = vmatprep.mubr.bf16.mxu0 %v787
      %1048 = vmatmul.mubr.bf16.gmra.mrb[0].mxu0 %v517
      %v1049 = vpop.f32.mrb[0].mxu0
      %v1050 = vadd.f32 %v889, %v1049
      %v1051 = vpop.f32.mrb[0].mxu0
      %v1052 = vpop.f32.mrb[0].mxu0
      %v1053 = vadd.f32 %v892, %v1052
      %v1054 = vpop.f32.mrb[0].mxu0
      %1055 = vmatprep.mubr.bf16.mxu0 %v790
      %1056 = vmatmul.mubr.bf16.gmra.mrb[0].mxu0 %v521
      %v1057 = vpop.f32.mrb[0].mxu0
      %v1058 = vadd.f32 %v897, %v1057
      %v1059 = vpop.f32.mrb[0].mxu0
      %v1060 = vpop.f32.mrb[0].mxu0
      %v1061 = vadd.f32 %v900, %v1060
      %v1062 = vpop.f32.mrb[0].mxu0
      %1063 = vmatprep.mubr.bf16.mxu0 %v793
      %1064 = vmatmul.mubr.bf16.gmra.mrb[0].mxu0 %v525
      %v1065 = vpop.f32.mrb[0].mxu0
      %v1066 = vadd.f32 %v905, %v1065
      %v1067 = vpop.f32.mrb[0].mxu0
      %v1068 = vpop.f32.mrb[0].mxu0
      %v1069 = vadd.f32 %v908, %v1068
      %v1070 = vpop.f32.mrb[0].mxu0
      %1071 = vmatprep.mubr.bf16.mxu0 %v796
      %1072 = vmatmul.mubr.bf16.gmra.mrb[0].mxu0 %v529
      %v1073 = vpop.f32.mrb[0].mxu0
      %v1074 = vadd.f32 %v913, %v1073
      %v1075 = vpop.f32.mrb[0].mxu0
      %v1076 = vpop.f32.mrb[0].mxu0
      %v1077 = vadd.f32 %v916, %v1076
      %v1078 = vpop.f32.mrb[0].mxu0
      %1079 = vmatprep.mubr.bf16.mxu0 %v799
      %1080 = vmatmul.mubr.bf16.gmra.mrb[0].mxu0 %v533
      %v1081 = vpop.f32.mrb[0].mxu0
      %v1082 = vadd.f32 %v921, %v1081
      %v1083 = vpop.f32.mrb[0].mxu0
      %v1084 = vpop.f32.mrb[0].mxu0
      %v1085 = vadd.f32 %v924, %v1084
      %v1086 = vpop.f32.mrb[0].mxu0
      %1087 = vmatprep.mubr.bf16.mxu0 %v802
      %1088 = vmatmul.mubr.bf16.gmra.mrb[0].mxu0 %v537
      %v1089 = vpop.f32.mrb[0].mxu0
      %v1090 = vadd.f32 %v929, %v1089
      %v1091 = vpop.f32.mrb[0].mxu0
      %v1092 = vpop.f32.mrb[0].mxu0
      %v1093 = vadd.f32 %v932, %v1092
      %v1094 = vpop.f32.mrb[0].mxu0
      %1095 = vmatprep.mubr.bf16.mxu0 %v805
      %1096 = vmatmul.mubr.bf16.gmra.mrb[0].mxu0 %v541
      %v1097 = vpop.f32.mrb[0].mxu0
      %v1098 = vadd.f32 %v937, %v1097
      %v1099 = vpop.f32.mrb[0].mxu0
      %v1100 = vpop.f32.mrb[0].mxu0
      %v1101 = vadd.f32 %v940, %v1100
      %v1102 = vpop.f32.mrb[0].mxu0
      %1103 = vmatprep.mubr.bf16.mxu0 %v808
      %1104 = vmatmul.mubr.bf16.gmra.mrb[0].mxu0 %v545
      %v1105 = vpop.f32.mrb[0].mxu0
      %v1106 = vadd.f32 %v945, %v1105
      %v1107 = vpop.f32.mrb[0].mxu0
      %v1108 = vpop.f32.mrb[0].mxu0
      %v1109 = vadd.f32 %v948, %v1108
      %v1110 = vpop.f32.mrb[0].mxu0
      %1111 = vmatprep.mubr.bf16.mxu0 %v811
      %1112 = vmatmul.mubr.bf16.gmra.mrb[0].mxu0 %v549
      %v1113 = vpop.f32.mrb[0].mxu0
      %v1114 = vadd.f32 %v953, %v1113
      %v1115 = vpop.f32.mrb[0].mxu0
      %v1116 = vpop.f32.mrb[0].mxu0
      %v1117 = vadd.f32 %v956, %v1116
      %v1118 = vpop.f32.mrb[0].mxu0
      %1119 = vmatprep.mubr.bf16.mxu0 %v814
      %1120 = vmatmul.mubr.bf16.gmra.mrb[0].mxu0 %v553
      %v1121 = vpop.f32.mrb[0].mxu0
      %v1122 = vadd.f32 %v961, %v1121
      %v1123 = vpop.f32.mrb[0].mxu0
      %v1124 = vpop.f32.mrb[0].mxu0
      %v1125 = vadd.f32 %v964, %v1124
      %v1126 = vpop.f32.mrb[0].mxu0
      %1127 = vmatprep.mubr.bf16.mxu0 %v817
      %1128 = vmatmul.mubr.bf16.gmra.mrb[0].mxu0 %v557
      %v1129 = vpop.f32.mrb[0].mxu0
      %v1130 = vadd.f32 %v969, %v1129
      %v1131 = vpop.f32.mrb[0].mxu0
      %v1132 = vpop.f32.mrb[0].mxu0
      %v1133 = vadd.f32 %v972, %v1132
      %v1134 = vpop.f32.mrb[0].mxu0
      %1135 = vmatprep.mubr.bf16.mxu0 %v820
      %1136 = vmatmul.mubr.bf16.gmra.mrb[0].mxu0 %v561
      %v1137 = vpop.f32.mrb[0].mxu0
      %v1138 = vadd.f32 %v977, %v1137
      %v1139 = vpop.f32.mrb[0].mxu0
      %v1140 = vpop.f32.mrb[0].mxu0
      %v1141 = vadd.f32 %v980, %v1140
      %v1142 = vpop.f32.mrb[0].mxu0
      %1143 = vdwg.mxu0
      %v1144 = vpack.c.bf16 %v1021, %v1018
      %v1145 = vpack.c.bf16 %v1029, %v1026
      %v1146 = vpack.c.bf16 %v1037, %v1034
      %v1147 = vpack.c.bf16 %v1045, %v1042
      %v1148 = vpack.c.bf16 %v1053, %v1050
      %v1149 = vpack.c.bf16 %v1061, %v1058
      %v1150 = vpack.c.bf16 %v1069, %v1066
      %v1151 = vpack.c.bf16 %v1077, %v1074
      %v1152 = vpack.c.bf16 %v1085, %v1082
      %v1153 = vpack.c.bf16 %v1093, %v1090
      %v1154 = vpack.c.bf16 %v1101, %v1098
      %v1155 = vpack.c.bf16 %v1109, %v1106
      %v1156 = vpack.c.bf16 %v1117, %v1114
      %v1157 = vpack.c.bf16 %v1125, %v1122
      %v1158 = vpack.c.bf16 %v1133, %v1130
      %v1159 = vpack.c.bf16 %v1141, %v1138
      %v1176 = vunpack.c.l.b16 %v1144
      %v1177 = vunpack.c.h.b16 %v1144
      %v1178 = vunpack.c.l.b16 %v1145
      %v1179 = vunpack.c.h.b16 %v1145
      %v1180 = vunpack.c.l.b16 %v1146
      %v1181 = vunpack.c.h.b16 %v1146
      %v1182 = vunpack.c.l.b16 %v1147
      %v1183 = vunpack.c.h.b16 %v1147
      %v1184 = vunpack.c.l.b16 %v1148
      %v1185 = vunpack.c.h.b16 %v1148
      %v1186 = vunpack.c.l.b16 %v1149
      %v1187 = vunpack.c.h.b16 %v1149
      %v1188 = vunpack.c.l.b16 %v1150
      %v1189 = vunpack.c.h.b16 %v1150
      %v1190 = vunpack.c.l.b16 %v1151
      %v1191 = vunpack.c.h.b16 %v1151
      %v1192 = vunpack.c.l.b16 %v1152
      %v1193 = vunpack.c.h.b16 %v1152
      %v1194 = vunpack.c.l.b16 %v1153
      %v1195 = vunpack.c.h.b16 %v1153
      %v1196 = vunpack.c.l.b16 %v1154
      %v1197 = vunpack.c.h.b16 %v1154
      %v1198 = vunpack.c.l.b16 %v1155
      %v1199 = vunpack.c.h.b16 %v1155
      %v1200 = vunpack.c.l.b16 %v1156
      %v1201 = vunpack.c.h.b16 %v1156
      %v1202 = vunpack.c.l.b16 %v1157
      %v1203 = vunpack.c.h.b16 %v1157
      %v1204 = vunpack.c.l.b16 %v1158
      %v1205 = vunpack.c.h.b16 %v1158
      %v1206 = vunpack.c.l.b16 %v1159
      %v1207 = vunpack.c.h.b16 %v1159
      %v1208 = vpack.c.b16 %v1176, %v1176
      %v1209 = vpack.c.b16 %v1177, %v1177
      %v1210 = vpack.c.b16 %v1178, %v1178
      %v1211 = vpack.c.b16 %v1179, %v1179
      %v1212 = vpack.c.b16 %v1180, %v1180
      %v1213 = vpack.c.b16 %v1181, %v1181
      %v1214 = vpack.c.b16 %v1182, %v1182
      %v1215 = vpack.c.b16 %v1183, %v1183
      %v1216 = vpack.c.b16 %v1184, %v1184
      %v1217 = vpack.c.b16 %v1185, %v1185
      %v1218 = vpack.c.b16 %v1186, %v1186
      %v1219 = vpack.c.b16 %v1187, %v1187
      %v1220 = vpack.c.b16 %v1188, %v1188
      %v1221 = vpack.c.b16 %v1189, %v1189
      %v1222 = vpack.c.b16 %v1190, %v1190
      %v1223 = vpack.c.b16 %v1191, %v1191
      %v1224 = vpack.c.b16 %v1192, %v1192
      %v1225 = vpack.c.b16 %v1193, %v1193
      %v1226 = vpack.c.b16 %v1194, %v1194
      %v1227 = vpack.c.b16 %v1195, %v1195
      %v1228 = vpack.c.b16 %v1196, %v1196
      %v1229 = vpack.c.b16 %v1197, %v1197
      %v1230 = vpack.c.b16 %v1198, %v1198
      %v1231 = vpack.c.b16 %v1199, %v1199
      %v1232 = vpack.c.b16 %v1200, %v1200
      %v1233 = vpack.c.b16 %v1201, %v1201
      %v1234 = vpack.c.b16 %v1202, %v1202
      %v1235 = vpack.c.b16 %v1203, %v1203
      %v1236 = vpack.c.b16 %v1204, %v1204
      %v1237 = vpack.c.b16 %v1205, %v1205
      %v1238 = vpack.c.b16 %v1206, %v1206
      %v1239 = vpack.c.b16 %v1207, %v1207
      %1272 = vst [vmem:[%s182] sm:$0xf] %v1208
      %1273 = vst [vmem:[%s182 + $0x4] sm:$0xf] %v1209
      %1274 = vst [vmem:[%s182 + $0x8] sm:$0xf] %v1210
      %1275 = vst [vmem:[%s182 + $0xc] sm:$0xf] %v1211
      %1276 = vst [vmem:[%s182 + $0x10] sm:$0xf] %v1212
      %1277 = vst [vmem:[%s182 + $0x14] sm:$0xf] %v1213
      %1278 = vst [vmem:[%s182 + $0x18] sm:$0xf] %v1214
      %1279 = vst [vmem:[%s182 + $0x1c] sm:$0xf] %v1215
      %1280 = vst [vmem:[%s182 + $0x20] sm:$0xf] %v1216
      %1281 = vst [vmem:[%s182 + $0x24] sm:$0xf] %v1217
      %1282 = vst [vmem:[%s182 + $0x28] sm:$0xf] %v1218
      %1283 = vst [vmem:[%s182 + $0x2c] sm:$0xf] %v1219
      %1284 = vst [vmem:[%s182 + $0x30] sm:$0xf] %v1220
      %1285 = vst [vmem:[%s182 + $0x34] sm:$0xf] %v1221
      %1286 = vst [vmem:[%s182 + $0x38] sm:$0xf] %v1222
      %1287 = vst [vmem:[%s182 + $0x3c] sm:$0xf] %v1223
      %1288 = vst [vmem:[%s182 + $0x40] sm:$0xf] %v1224
      %1289 = vst [vmem:[%s182 + $0x44] sm:$0xf] %v1225
      %1290 = vst [vmem:[%s182 + $0x48] sm:$0xf] %v1226
      %1291 = vst [vmem:[%s182 + $0x4c] sm:$0xf] %v1227
      %1292 = vst [vmem:[%s182 + $0x50] sm:$0xf] %v1228
      %1293 = vst [vmem:[%s182 + $0x54] sm:$0xf] %v1229
      %1294 = vst [vmem:[%s182 + $0x58] sm:$0xf] %v1230
      %1295 = vst [vmem:[%s182 + $0x5c] sm:$0xf] %v1231
      %1296 = vst [vmem:[%s182 + $0x60] sm:$0xf] %v1232
      %1297 = vst [vmem:[%s182 + $0x64] sm:$0xf] %v1233
      %1298 = vst [vmem:[%s182 + $0x68] sm:$0xf] %v1234
      %1299 = vst [vmem:[%s182 + $0x6c] sm:$0xf] %v1235
      %1300 = vst [vmem:[%s182 + $0x70] sm:$0xf] %v1236
      %1301 = vst [vmem:[%s182 + $0x74] sm:$0xf] %v1237
      %1302 = vst [vmem:[%s182 + $0x78] sm:$0xf] %v1238
      %1303 = vst [vmem:[%s182 + $0x7c] sm:$0xf] %v1239
      %v1304 = vadd.f32 %v1018, %v1021
      %v1305 = vadd.f32 %v1304, %v1026
      %v1306 = vadd.f32 %v1305, %v1029
      %v1307 = vadd.f32 %v1306, %v1034
      %v1308 = vadd.f32 %v1307, %v1037
      %v1309 = vadd.f32 %v1308, %v1042
      %v1310 = vadd.f32 %v1309, %v1045
      %v1311 = vadd.f32 %v1310, %v1050
      %v1312 = vadd.f32 %v1311, %v1053
      %v1313 = vadd.f32 %v1312, %v1058
      %v1314 = vadd.f32 %v1313, %v1061
      %v1315 = vadd.f32 %v1314, %v1066
      %v1316 = vadd.f32 %v1315, %v1069
      %v1317 = vadd.f32 %v1316, %v1074
      %v1318 = vadd.f32 %v1317, %v1077
      %v1319 = vadd.f32 %v1318, %v1082
      %v1320 = vadd.f32 %v1319, %v1085
      %v1321 = vadd.f32 %v1320, %v1090
      %v1322 = vadd.f32 %v1321, %v1093
      %v1323 = vadd.f32 %v1322, %v1098
      %v1324 = vadd.f32 %v1323, %v1101
      %v1325 = vadd.f32 %v1324, %v1106
      %v1326 = vadd.f32 %v1325, %v1109
      %v1327 = vadd.f32 %v1326, %v1114
      %v1328 = vadd.f32 %v1327, %v1117
      %v1329 = vadd.f32 %v1328, %v1122
      %v1330 = vadd.f32 %v1329, %v1125
      %v1331 = vadd.f32 %v1330, %v1130
      %v1332 = vadd.f32 %v1331, %v1133
      %v1333 = vadd.f32 %v1332, %v1138
      %v1334 = vadd.f32 %v1333, %v1141
      %v1335 = vrot.slane %v1334, 4
      %v1336 = vadd.f32 %v1334, %v1335
      %v1337 = vrot.slane %v1336, 2
      %v1338 = vadd.f32 %v1336, %v1337
      %v1339 = vrot.slane %v1338, 1
      %v1340 = vadd.f32 %v1338, %v1339
      %v1341 = vmul.f32 %v1018, %v1018
      %v1342 = vmul.f32 %v1021, %v1021
      %v1343 = vmul.f32 %v1026, %v1026
      %v1344 = vmul.f32 %v1029, %v1029
      %v1345 = vmul.f32 %v1034, %v1034
      %v1346 = vmul.f32 %v1037, %v1037
      %v1347 = vmul.f32 %v1042, %v1042
      %v1348 = vmul.f32 %v1045, %v1045
      %v1349 = vmul.f32 %v1050, %v1050
      %v1350 = vmul.f32 %v1053, %v1053
      %v1351 = vmul.f32 %v1058, %v1058
      %v1352 = vmul.f32 %v1061, %v1061
      %v1353 = vmul.f32 %v1066, %v1066
      %v1354 = vmul.f32 %v1069, %v1069
      %v1355 = vmul.f32 %v1074, %v1074
      %v1356 = vmul.f32 %v1077, %v1077
      %v1357 = vmul.f32 %v1082, %v1082
      %v1358 = vmul.f32 %v1085, %v1085
      %v1359 = vmul.f32 %v1090, %v1090
      %v1360 = vmul.f32 %v1093, %v1093
      %v1361 = vmul.f32 %v1098, %v1098
      %v1362 = vmul.f32 %v1101, %v1101
      %v1363 = vmul.f32 %v1106, %v1106
      %v1364 = vmul.f32 %v1109, %v1109
      %v1365 = vmul.f32 %v1114, %v1114
      %v1366 = vmul.f32 %v1117, %v1117
      %v1367 = vmul.f32 %v1122, %v1122
      %v1368 = vmul.f32 %v1125, %v1125
      %v1369 = vmul.f32 %v1130, %v1130
      %v1370 = vmul.f32 %v1133, %v1133
      %v1371 = vmul.f32 %v1138, %v1138
      %v1372 = vmul.f32 %v1141, %v1141
      %v1373 = vadd.f32 %v1341, %v1342
      %v1374 = vadd.f32 %v1373, %v1343
      %v1375 = vadd.f32 %v1374, %v1344
      %v1376 = vadd.f32 %v1375, %v1345
      %v1377 = vadd.f32 %v1376, %v1346
      %v1378 = vadd.f32 %v1377, %v1347
      %v1379 = vadd.f32 %v1378, %v1348
      %v1380 = vadd.f32 %v1379, %v1349
      %v1381 = vadd.f32 %v1380, %v1350
      %v1382 = vadd.f32 %v1381, %v1351
      %v1383 = vadd.f32 %v1382, %v1352
      %v1384 = vadd.f32 %v1383, %v1353
      %v1385 = vadd.f32 %v1384, %v1354
      %v1386 = vadd.f32 %v1385, %v1355
      %v1387 = vadd.f32 %v1386, %v1356
      %v1388 = vadd.f32 %v1387, %v1357
      %v1389 = vadd.f32 %v1388, %v1358
      %v1390 = vadd.f32 %v1389, %v1359
      %v1391 = vadd.f32 %v1390, %v1360
      %v1392 = vadd.f32 %v1391, %v1361
      %v1393 = vadd.f32 %v1392, %v1362
      %v1394 = vadd.f32 %v1393, %v1363
      %v1395 = vadd.f32 %v1394, %v1364
      %v1396 = vadd.f32 %v1395, %v1365
      %v1397 = vadd.f32 %v1396, %v1366
      %v1398 = vadd.f32 %v1397, %v1367
      %v1399 = vadd.f32 %v1398, %v1368
      %v1400 = vadd.f32 %v1399, %v1369
      %v1401 = vadd.f32 %v1400, %v1370
      %v1402 = vadd.f32 %v1401, %v1371
      %v1403 = vadd.f32 %v1402, %v1372
      %v1404 = vrot.slane %v1403, 4
      %v1405 = vadd.f32 %v1403, %v1404
      %v1406 = vrot.slane %v1405, 2
      %v1407 = vadd.f32 %v1405, %v1406
      %v1408 = vrot.slane %v1407, 1
      %v1409 = vadd.f32 %v1407, %v1408
      %vm1410 = vcmask 1040384
      %v1411 = vsel %vm1410, %v1340, %v1409
      %1412 = vst [vmem:[%s187] sm:$0x3] %v1411
      %s1413 = smul.u32 32, %s15
      %p1414 = scmp.lt.s32.totalorder %s1413, 127
      %s1415 = scalar_select %p1414, %s1413, 127
      %s1416 = smul.addr %s1415, 4
      %s1417 = scalar_lea.vmem %s2, %s1416
      %p1418 = scmp.lt.s32.totalorder %s15, 3
      %s1419 = scalar_select %p1418, %s15, 3
      %s1420 = smul.addr %s1419, 8
      %s1421 = scalar_lea.vmem %s3, %s1420
      // Predicated region
      $region29: #{octree_deconv_bn_elu.2} parent=27 // pred_check
        %p1422 = pneg %p80
      $region30: #{octree_deconv_bn_elu.2} parent=27 // pred_check_branch
        %1424 = sbr.rel (%p1422) target = $region32
      $region31: #{octree_deconv_bn_elu.2} parent=27 // pred_region
        %s1425 = smul.u32 32, %s15
      $region32: #{octree_deconv_bn_elu.2} parent=27 // pred_fallthru
        _
      // Predicated region
      $region33: #{octree_deconv_bn_elu.2} parent=27 // pred_check
        %p1426 = pneg %p106
      $region34: #{octree_deconv_bn_elu.2} parent=27 // pred_check_branch
        %1428 = sbr.rel (%p1426) target = $region36
      $region35: #{octree_deconv_bn_elu.2} parent=27 // pred_region
        _
      $region36: #{octree_deconv_bn_elu.2} parent=27 // pred_fallthru
        _
    $region28: #{octree_deconv_bn_elu.2} parent=5 // pred_fallthru
      _
    %p1429 = scmp.le.s32.totalorder 2, %s10
    // Predicated region
    $region37: #{octree_deconv_bn_elu.2} parent=5 // pred_check
      %p1430 = pneg %p1429
    $region38: #{octree_deconv_bn_elu.2} parent=5 // pred_check_branch
      %1432 = sbr.rel (%p1430) target = $region40
    $region39: #{octree_deconv_bn_elu.2} parent=5 // pred_region
      %s1433 = ssub.s32 %s10, 2
      // Predicated region
      $region41: #{octree_deconv_bn_elu.2} parent=39 // pred_check
        %p1434 = pneg %p86
      $region42: #{octree_deconv_bn_elu.2} parent=39 // pred_check_branch
        %1436 = sbr.rel (%p1434) target = $region44
      $region43: #{octree_deconv_bn_elu.2} parent=39 // pred_region
        %s1437 = smul.u32 32, %s16
        %p1438 = scmp.lt.s32.totalorder %s1437, 127
        %s1439 = scalar_select %p1438, %s1437, 127
        %s1440 = smul.addr %s1439, 4
        %s1441 = scalar_lea.vmem %s2, %s1440
      $region44: #{octree_deconv_bn_elu.2} parent=39 // pred_fallthru
        _
      // Predicated region
      $region45: #{octree_deconv_bn_elu.2} parent=39 // pred_check
        %p1442 = pneg %p112
      $region46: #{octree_deconv_bn_elu.2} parent=39 // pred_check_branch
        %1444 = sbr.rel (%p1442) target = $region48
      $region47: #{octree_deconv_bn_elu.2} parent=39 // pred_region
        %p1445 = scmp.lt.s32.totalorder %s16, 3
        %s1446 = scalar_select %p1445, %s16, 3
        %s1447 = smul.addr %s1446, 8
        %s1448 = scalar_lea.vmem %s3, %s1447
      $region48: #{octree_deconv_bn_elu.2} parent=39 // pred_fallthru
        _
    $region40: #{octree_deconv_bn_elu.2} parent=5 // pred_fallthru
      _
  $region6: #{octree_deconv_bn_elu.2} parent=0 // loop_footer
    %s14 = sadd.s32 1, %s10
  $region7: #{octree_deconv_bn_elu.2} parent=0 // loop_footer_branch
    %9 = sbr.rel target = $region3
  $region8: #{octree_deconv_bn_elu.2} parent=0 // loop_exit
    _

// kernel: octree_deconv_bn_elu.3
$region0: #{octree_deconv_bn_elu.3}
  #allocation0 [shape = 'u32[]', space=smem, size = 0x4, offset = 0x4, fixed_abs, tag = 'smem constant byte address 0x4 - core index']
  #allocation1 [shape = 'u32[144,128]{1,0:T(1,128)}', space=vmem, size = 0x12000, scoped, tag = 'internal scratch']
  %s0 = inlined_call_operand.vmem [shape: bf16[1024,128], index: 0, kind: input, shape index: {}]
  %s1 = inlined_call_operand.vmem [shape: f32[1,128], index: 1, kind: input, shape index: {}]
  %s2 = inlined_call_operand.vmem [shape: f32[1,128], index: 2, kind: input, shape index: {}]
  %s3 = inlined_call_operand.vmem [shape: f32[1024,128], index: 3, kind: output, shape index: {}]
  %s4 = sld [smem:[#allocation0]]
  $region45: #{octree_deconv_bn_elu.3} parent=0
    _
  %s6 = ssub.s32 1, %s4
  %s7 = scalar_select 0, %s6, %s4
  loop: start=0, step=1, limit=6
  $region2: #{octree_deconv_bn_elu.3} parent=0 // loop_pre_header
    _
  $region3: #{octree_deconv_bn_elu.3} parent=0 // loop_header
    %s9 = sphi 0, %s13
    %p10 = scmp.ge.s32.totalorder %s9, 6
    %s19 = sphi 0, %s21
    %s22 = sphi 0, %s19
    %s23 = sphi 0, %s22
    %s39 = sphi 0, %s23
    %s43 = sphi 0, %s43
    %s45 = sphi 0, %s43
    %s46 = sphi 0, %s45
    %s60 = sphi 0, %s46
    %s64 = sphi 0, %s64
    %s66 = sphi 0, %s64
    %s67 = sphi 0, %s66
    %s81 = sphi 0, %s67
    %s87 = sphi 0, %s89
    %s90 = sphi 0, %s87
    %s91 = sphi 0, %s90
    %s107 = sphi 0, %s91
  $region4: #{octree_deconv_bn_elu.3} parent=0 // loop_header_branch
    %12 = sbr.rel (%p10) target = $region8
  $region5: #{octree_deconv_bn_elu.3} parent=0 // loop_body
    %s14 = ssub.s32 %s9, 1
    %s15 = ssub.s32 %s9, 2
    %s16 = sadd.s32 %s9, 1
    %s17 = ssub.s32 %s9, %s16
    %p18 = scmp.eq.s32.totalorder %s17, 0
    %s20 = sadd.s32 %s19, 1
    %s21 = scalar_select %p18, %s19, %s20
    %p24 = pneg %p18
    %p25 = scmp.eq.s32.totalorder %s9, 3
    %p26 = por %p24, %p25
    %p27 = scmp.ne.s32.totalorder %s19, %s22
    %p28 = scmp.eq.s32.totalorder %s9, 0
    %p29 = por %p27, %p28
    %p30 = scmp.ne.s32.totalorder %s19, %s22
    %p31 = scmp.eq.s32.totalorder %s14, 3
    %p32 = por %p30, %p31
    %p33 = scmp.ne.s32.totalorder %s22, %s23
    %p34 = scmp.eq.s32.totalorder %s14, 0
    %p35 = por %p33, %p34
    %p36 = scmp.ne.s32.totalorder %s22, %s23
    %p37 = scmp.eq.s32.totalorder %s15, 3
    %p38 = por %p36, %p37
    %p40 = scmp.ne.s32.totalorder %s23, %s39
    %p41 = scmp.eq.s32.totalorder %s15, 0
    %p42 = por %p40, %p41
    %s44 = sadd.s32 %s43, 1
    %p47 = scmp.eq.s32.totalorder %s9, 3
    %p48 = scmp.ne.s32.totalorder %s43, %s45
    %p49 = scmp.eq.s32.totalorder %s9, 0
    %p50 = por %p48, %p49
    %p51 = scmp.ne.s32.totalorder %s43, %s45
    %p52 = scmp.eq.s32.totalorder %s14, 3
    %p53 = por %p51, %p52
    %p54 = scmp.ne.s32.totalorder %s45, %s46
    %p55 = scmp.eq.s32.totalorder %s14, 0
    %p56 = por %p54, %p55
    %p57 = scmp.ne.s32.totalorder %s45, %s46
    %p58 = scmp.eq.s32.totalorder %s15, 3
    %p59 = por %p57, %p58
    %p61 = scmp.ne.s32.totalorder %s46, %s60
    %p62 = scmp.eq.s32.totalorder %s15, 0
    %p63 = por %p61, %p62
    %s65 = sadd.s32 %s64, 1
    %p68 = scmp.eq.s32.totalorder %s9, 3
    %p69 = scmp.ne.s32.totalorder %s64, %s66
    %p70 = scmp.eq.s32.totalorder %s9, 0
    %p71 = por %p69, %p70
    %p72 = scmp.ne.s32.totalorder %s64, %s66
    %p73 = scmp.eq.s32.totalorder %s14, 3
    %p74 = por %p72, %p73
    %p75 = scmp.ne.s32.totalorder %s66, %s67
    %p76 = scmp.eq.s32.totalorder %s14, 0
    %p77 = por %p75, %p76
    %p78 = scmp.ne.s32.totalorder %s66, %s67
    %p79 = scmp.eq.s32.totalorder %s15, 3
    %p80 = por %p78, %p79
    %p82 = scmp.ne.s32.totalorder %s67, %s81
    %p83 = scmp.eq.s32.totalorder %s15, 0
    %p84 = por %p82, %p83
    %s85 = ssub.s32 %s9, %s16
    %p86 = scmp.eq.s32.totalorder %s85, 0
    %s88 = sadd.s32 %s87, 1
    %s89 = scalar_select %p86, %s87, %s88
    %p92 = pneg %p86
    %p93 = scmp.eq.s32.totalorder %s9, 3
    %p94 = por %p92, %p93
    %p95 = scmp.ne.s32.totalorder %s87, %s90
    %p96 = scmp.eq.s32.totalorder %s9, 0
    %p97 = por %p95, %p96
    %p98 = scmp.ne.s32.totalorder %s87, %s90
    %p99 = scmp.eq.s32.totalorder %s14, 3
    %p100 = por %p98, %p99
    %p101 = scmp.ne.s32.totalorder %s90, %s91
    %p102 = scmp.eq.s32.totalorder %s14, 0
    %p103 = por %p101, %p102
    %p104 = scmp.ne.s32.totalorder %s90, %s91
    %p105 = scmp.eq.s32.totalorder %s15, 3
    %p106 = por %p104, %p105
    %p108 = scmp.ne.s32.totalorder %s91, %s107
    %p109 = scmp.eq.s32.totalorder %s15, 0
    %p110 = por %p108, %p109
    %p111 = scmp.le.s32.totalorder 1, %s9
    %p112 = scmp.lt.s32.totalorder %s9, 5
    %p113 = pnand %p111, %p112
    %p114 = pneg %p113
    // Predicated region
    $region9: #{octree_deconv_bn_elu.3} parent=5 // pred_check
      _
    $region10: #{octree_deconv_bn_elu.3} parent=5 // pred_check_branch
      %116 = sbr.rel (%p113) target = $region12
    $region11: #{octree_deconv_bn_elu.3} parent=5 // pred_region
      %s117 = ssub.s32 %s9, 1
      // Predicated region
      $region13: #{octree_deconv_bn_elu.3} parent=11 // pred_check
        %p118 = pneg %p56
      $region14: #{octree_deconv_bn_elu.3} parent=11 // pred_check_branch
        %120 = sbr.rel (%p118) target = $region16
      $region15: #{octree_deconv_bn_elu.3} parent=11 // pred_region
        _
      $region16: #{octree_deconv_bn_elu.3} parent=11 // pred_fallthru
        _
      // Predicated region
      $region17: #{octree_deconv_bn_elu.3} parent=11 // pred_check
        %p121 = pneg %p77
      $region18: #{octree_deconv_bn_elu.3} parent=11 // pred_check_branch
        %123 = sbr.rel (%p121) target = $region20
      $region19: #{octree_deconv_bn_elu.3} parent=11 // pred_region
        _
      $region20: #{octree_deconv_bn_elu.3} parent=11 // pred_fallthru
        _
    $region12: #{octree_deconv_bn_elu.3} parent=5 // pred_fallthru
      _
    %p124 = scmp.lt.s32.totalorder %s9, 4
    // Predicated region
    $region21: #{octree_deconv_bn_elu.3} parent=5 // pred_check
      %p125 = pneg %p124
    $region22: #{octree_deconv_bn_elu.3} parent=5 // pred_check_branch
      %127 = sbr.rel (%p125) target = $region24
    $region23: #{octree_deconv_bn_elu.3} parent=5 // pred_region
      // Predicated region
      $region25: #{octree_deconv_bn_elu.3} parent=23 // pred_check
        %p128 = pneg %p29
      $region26: #{octree_deconv_bn_elu.3} parent=23 // pred_check_branch
        %130 = sbr.rel (%p128) target = $region28
      $region27: #{octree_deconv_bn_elu.3} parent=23 // pred_region
        %s131 = smul.u32 32, %s9
        %p132 = scmp.lt.s32.totalorder %s131, 127
        %s133 = scalar_select %p132, %s131, 127
        %s134 = smul.addr %s133, 4
        %s135 = scalar_lea.vmem %s0, %s134
        %s136 = smul.u32 32, %s9
      $region28: #{octree_deconv_bn_elu.3} parent=23 // pred_fallthru
        _
    $region24: #{octree_deconv_bn_elu.3} parent=5 // pred_fallthru
      _
    %p137 = scmp.le.s32.totalorder 1, %s9
    %p138 = scmp.lt.s32.totalorder %s9, 5
    %p139 = pnand %p137, %p138
    %p140 = pneg %p139
    // Predicated region
    $region29: #{octree_deconv_bn_elu.3} parent=5 // pred_check
      _
    $region30: #{octree_deconv_bn_elu.3} parent=5 // pred_check_branch
      %142 = sbr.rel (%p139) target = $region32
    $region31: #{octree_deconv_bn_elu.3} parent=5 // pred_region
      %s143 = ssub.s32 %s9, 1
      %s144 = smul.u32 32, %s14
      %p145 = scmp.lt.s32.totalorder %s144, 127
      %s146 = scalar_select %p145, %s144, 127
      %s147 = smul.addr %s146, 4
      %s148 = scalar_lea.vmem %s0, %s147
      %p149 = pneg %p35
      %p150 = pneg %p32
      %p151 = pneg %p56
      %p152 = pneg %p53
      %p153 = pneg %p77
      %p154 = pneg %p74
      %p155 = pneg %p103
      %p156 = pneg %p100
      %s157 = smul.u32 32, %s14
      %p158 = scmp.lt.s32.totalorder %s157, 127
      %s159 = scalar_select %p158, %s157, 127
      %s160 = smul.addr %s159, 8
      %s161 = scalar_lea.vmem %s3, %s160
      %s162 = smul.u32 32, %s14
      %p163 = scmp.lt.s32.totalorder %s162, 127
      %s164 = scalar_select %p163, %s162, 127
      %s165 = smul.addr %s164, 4
      %s166 = scalar_lea.vmem %s0, %s165
      %s167 = smul.u32 32, %s14
      %s168 = smul.u32 32, %s14
      %p169 = scmp.lt.s32.totalorder %s168, 127
      %s170 = scalar_select %p169, %s168, 127
      %s171 = smul.addr %s170, 8
      %s172 = scalar_lea.vmem %s3, %s171
      %s173 = smul.u32 32, %s14
      %v174 = vld [vmem:[%s166] sm:$0xf]
      %v175 = vld [vmem:[%s166 + $0x4] sm:$0xf]
      %v176 = vld [vmem:[%s166 + $0x8] sm:$0xf]
      %v177 = vld [vmem:[%s166 + $0xc] sm:$0xf]
      %v178 = vld [vmem:[%s166 + $0x10] sm:$0xf]
      %v179 = vld [vmem:[%s166 + $0x14] sm:$0xf]
      %v180 = vld [vmem:[%s166 + $0x18] sm:$0xf]
      %v181 = vld [vmem:[%s166 + $0x1c] sm:$0xf]
      %v182 = vld [vmem:[%s166 + $0x20] sm:$0xf]
      %v183 = vld [vmem:[%s166 + $0x24] sm:$0xf]
      %v184 = vld [vmem:[%s166 + $0x28] sm:$0xf]
      %v185 = vld [vmem:[%s166 + $0x2c] sm:$0xf]
      %v186 = vld [vmem:[%s166 + $0x30] sm:$0xf]
      %v187 = vld [vmem:[%s166 + $0x34] sm:$0xf]
      %v188 = vld [vmem:[%s166 + $0x38] sm:$0xf]
      %v189 = vld [vmem:[%s166 + $0x3c] sm:$0xf]
      %v190 = vld [vmem:[%s166 + $0x40] sm:$0xf]
      %v191 = vld [vmem:[%s166 + $0x44] sm:$0xf]
      %v192 = vld [vmem:[%s166 + $0x48] sm:$0xf]
      %v193 = vld [vmem:[%s166 + $0x4c] sm:$0xf]
      %v194 = vld [vmem:[%s166 + $0x50] sm:$0xf]
      %v195 = vld [vmem:[%s166 + $0x54] sm:$0xf]
      %v196 = vld [vmem:[%s166 + $0x58] sm:$0xf]
      %v197 = vld [vmem:[%s166 + $0x5c] sm:$0xf]
      %v198 = vld [vmem:[%s166 + $0x60] sm:$0xf]
      %v199 = vld [vmem:[%s166 + $0x64] sm:$0xf]
      %v200 = vld [vmem:[%s166 + $0x68] sm:$0xf]
      %v201 = vld [vmem:[%s166 + $0x6c] sm:$0xf]
      %v202 = vld [vmem:[%s166 + $0x70] sm:$0xf]
      %v203 = vld [vmem:[%s166 + $0x74] sm:$0xf]
      %v204 = vld [vmem:[%s166 + $0x78] sm:$0xf]
      %v205 = vld [vmem:[%s166 + $0x7c] sm:$0xf]
      %v206 = vunpack.c.l.bf16 %v174
      %v207 = vunpack.c.l.bf16 %v175
      %v208 = vunpack.c.l.bf16 %v176
      %v209 = vunpack.c.l.bf16 %v177
      %v210 = vunpack.c.l.bf16 %v178
      %v211 = vunpack.c.l.bf16 %v179
      %v212 = vunpack.c.l.bf16 %v180
      %v213 = vunpack.c.l.bf16 %v181
      %v214 = vunpack.c.l.bf16 %v182
      %v215 = vunpack.c.l.bf16 %v183
      %v216 = vunpack.c.l.bf16 %v184
      %v217 = vunpack.c.l.bf16 %v185
      %v218 = vunpack.c.l.bf16 %v186
      %v219 = vunpack.c.l.bf16 %v187
      %v220 = vunpack.c.l.bf16 %v188
      %v221 = vunpack.c.l.bf16 %v189
      %v222 = vunpack.c.l.bf16 %v190
      %v223 = vunpack.c.l.bf16 %v191
      %v224 = vunpack.c.l.bf16 %v192
      %v225 = vunpack.c.l.bf16 %v193
      %v226 = vunpack.c.l.bf16 %v194
      %v227 = vunpack.c.l.bf16 %v195
      %v228 = vunpack.c.l.bf16 %v196
      %v229 = vunpack.c.l.bf16 %v197
      %v230 = vunpack.c.l.bf16 %v198
      %v231 = vunpack.c.l.bf16 %v199
      %v232 = vunpack.c.l.bf16 %v200
      %v233 = vunpack.c.l.bf16 %v201
      %v234 = vunpack.c.l.bf16 %v202
      %v235 = vunpack.c.l.bf16 %v203
      %v236 = vunpack.c.l.bf16 %v204
      %v237 = vunpack.c.l.bf16 %v205
      %v238 = vld [vmem:[%s1] sm:$0x1]
      %v240 = vlaneseq
      %v241 = vshrl.u32 %v240, 7
      %v242 = vsub.s32 0, %v241
      %v243 = vrot.slane %v238, %v242
      %v245 = vmul.f32 %v206, %v243
      %v246 = vmul.f32 %v207, %v243
      %v247 = vmul.f32 %v208, %v243
      %v248 = vmul.f32 %v209, %v243
      %v249 = vmul.f32 %v210, %v243
      %v250 = vmul.f32 %v211, %v243
      %v251 = vmul.f32 %v212, %v243
      %v252 = vmul.f32 %v213, %v243
      %v253 = vmul.f32 %v214, %v243
      %v254 = vmul.f32 %v215, %v243
      %v255 = vmul.f32 %v216, %v243
      %v256 = vmul.f32 %v217, %v243
      %v257 = vmul.f32 %v218, %v243
      %v258 = vmul.f32 %v219, %v243
      %v259 = vmul.f32 %v220, %v243
      %v260 = vmul.f32 %v221, %v243
      %v261 = vmul.f32 %v222, %v243
      %v262 = vmul.f32 %v223, %v243
      %v263 = vmul.f32 %v224, %v243
      %v264 = vmul.f32 %v225, %v243
      %v265 = vmul.f32 %v226, %v243
      %v266 = vmul.f32 %v227, %v243
      %v267 = vmul.f32 %v228, %v243
      %v268 = vmul.f32 %v229, %v243
      %v269 = vmul.f32 %v230, %v243
      %v270 = vmul.f32 %v231, %v243
      %v271 = vmul.f32 %v232, %v243
      %v272 = vmul.f32 %v233, %v243
      %v273 = vmul.f32 %v234, %v243
      %v274 = vmul.f32 %v235, %v243
      %v275 = vmul.f32 %v236, %v243
      %v276 = vmul.f32 %v237, %v243
      %v277 = vld [vmem:[%s2] sm:$0x1]
      %v279 = vlaneseq
      %v280 = vshrl.u32 %v279, 7
      %v281 = vsub.s32 0, %v280
      %v282 = vrot.slane %v277, %v281
      %v284 = vadd.f32 %v245, %v282
      %v285 = vadd.f32 %v246, %v282
      %v286 = vadd.f32 %v247, %v282
      %v287 = vadd.f32 %v248, %v282
      %v288 = vadd.f32 %v249, %v282
      %v289 = vadd.f32 %v250, %v282
      %v290 = vadd.f32 %v251, %v282
      %v291 = vadd.f32 %v252, %v282
      %v292 = vadd.f32 %v253, %v282
      %v293 = vadd.f32 %v254, %v282
      %v294 = vadd.f32 %v255, %v282
      %v295 = vadd.f32 %v256, %v282
      %v296 = vadd.f32 %v257, %v282
      %v297 = vadd.f32 %v258, %v282
      %v298 = vadd.f32 %v259, %v282
      %v299 = vadd.f32 %v260, %v282
      %v300 = vadd.f32 %v261, %v282
      %v301 = vadd.f32 %v262, %v282
      %v302 = vadd.f32 %v263, %v282
      %v303 = vadd.f32 %v264, %v282
      %v304 = vadd.f32 %v265, %v282
      %v305 = vadd.f32 %v266, %v282
      %v306 = vadd.f32 %v267, %v282
      %v307 = vadd.f32 %v268, %v282
      %v308 = vadd.f32 %v269, %v282
      %v309 = vadd.f32 %v270, %v282
      %v310 = vadd.f32 %v271, %v282
      %v311 = vadd.f32 %v272, %v282
      %v312 = vadd.f32 %v273, %v282
      %v313 = vadd.f32 %v274, %v282
      %v314 = vadd.f32 %v275, %v282
      %v315 = vadd.f32 %v276, %v282
      %v316 = vmul.f32 %v284, 0.5
      %v317 = vmul.f32 %v285, 0.5
      %v318 = vmul.f32 %v286, 0.5
      %v319 = vmul.f32 %v287, 0.5
      %v320 = vmul.f32 %v288, 0.5
      %v321 = vmul.f32 %v289, 0.5
      %v322 = vmul.f32 %v290, 0.5
      %v323 = vmul.f32 %v291, 0.5
      %v324 = vmul.f32 %v292, 0.5
      %v325 = vmul.f32 %v293, 0.5
      %v326 = vmul.f32 %v294, 0.5
      %v327 = vmul.f32 %v295, 0.5
      %v328 = vmul.f32 %v296, 0.5
      %v329 = vmul.f32 %v297, 0.5
      %v330 = vmul.f32 %v298, 0.5
      %v331 = vmul.f32 %v299, 0.5
      %v332 = vmul.f32 %v300, 0.5
      %v333 = vmul.f32 %v301, 0.5
      %v334 = vmul.f32 %v302, 0.5
      %v335 = vmul.f32 %v303, 0.5
      %v336 = vmul.f32 %v304, 0.5
      %v337 = vmul.f32 %v305, 0.5
      %v338 = vmul.f32 %v306, 0.5
      %v339 = vmul.f32 %v307, 0.5
      %v340 = vmul.f32 %v308, 0.5
      %v341 = vmul.f32 %v309, 0.5
      %v342 = vmul.f32 %v310, 0.5
      %v343 = vmul.f32 %v311, 0.5
      %v344 = vmul.f32 %v312, 0.5
      %v345 = vmul.f32 %v313, 0.5
      %v346 = vmul.f32 %v314, 0.5
      %v347 = vmul.f32 %v315, 0.5
      %v348 = vmul.f32 %v284, 0.70710677
      %v349 = vmul.f32 %v285, 0.70710677
      %v350 = vmul.f32 %v286, 0.70710677
      %v351 = vmul.f32 %v287, 0.70710677
      %v352 = vmul.f32 %v288, 0.70710677
      %v353 = vmul.f32 %v289, 0.70710677
      %v354 = vmul.f32 %v290, 0.70710677
      %v355 = vmul.f32 %v291, 0.70710677
      %v356 = vmul.f32 %v292, 0.70710677
      %v357 = vmul.f32 %v293, 0.70710677
      %v358 = vmul.f32 %v294, 0.70710677
      %v359 = vmul.f32 %v295, 0.70710677
      %v360 = vmul.f32 %v296, 0.70710677
      %v361 = vmul.f32 %v297, 0.70710677
      %v362 = vmul.f32 %v298, 0.70710677
      %v363 = vmul.f32 %v299, 0.70710677
      %v364 = vmul.f32 %v300, 0.70710677
      %v365 = vmul.f32 %v301, 0.70710677
      %v366 = vmul.f32 %v302, 0.70710677
      %v367 = vmul.f32 %v303, 0.70710677
      %v368 = vmul.f32 %v304, 0.70710677
      %v369 = vmul.f32 %v305, 0.70710677
      %v370 = vmul.f32 %v306, 0.70710677
      %v371 = vmul.f32 %v307, 0.70710677
      %v372 = vmul.f32 %v308, 0.70710677
      %v373 = vmul.f32 %v309, 0.70710677
      %v374 = vmul.f32 %v310, 0.70710677
      %v375 = vmul.f32 %v311, 0.70710677
      %v376 = vmul.f32 %v312, 0.70710677
      %v377 = vmul.f32 %v313, 0.70710677
      %v378 = vmul.f32 %v314, 0.70710677
      %v379 = vmul.f32 %v315, 0.70710677
      %v380 = verf.f32.pop %v348
      %v381 = verf.f32.pop %v349
      %v382 = verf.f32.pop %v350
      %v383 = verf.f32.pop %v351
      %v384 = verf.f32.pop %v352
      %v385 = verf.f32.pop %v353
      %v386 = verf.f32.pop %v354
      %v387 = verf.f32.pop %v355
      %v388 = verf.f32.pop %v356
      %v389 = verf.f32.pop %v357
      %v390 = verf.f32.pop %v358
      %v391 = verf.f32.pop %v359
      %v392 = verf.f32.pop %v360
      %v393 = verf.f32.pop %v361
      %v394 = verf.f32.pop %v362
      %v395 = verf.f32.pop %v363
      %v396 = verf.f32.pop %v364
      %v397 = verf.f32.pop %v365
      %v398 = verf.f32.pop %v366
      %v399 = verf.f32.pop %v367
      %v400 = verf.f32.pop %v368
      %v401 = verf.f32.pop %v369
      %v402 = verf.f32.pop %v370
      %v403 = verf.f32.pop %v371
      %v404 = verf.f32.pop %v372
      %v405 = verf.f32.pop %v373
      %v406 = verf.f32.pop %v374
      %v407 = verf.f32.pop %v375
      %v408 = verf.f32.pop %v376
      %v409 = verf.f32.pop %v377
      %v410 = verf.f32.pop %v378
      %v411 = verf.f32.pop %v379
      %v412 = vadd.f32 %v380, 1.0
      %v413 = vadd.f32 %v381, 1.0
      %v414 = vadd.f32 %v382, 1.0
      %v415 = vadd.f32 %v383, 1.0
      %v416 = vadd.f32 %v384, 1.0
      %v417 = vadd.f32 %v385, 1.0
      %v418 = vadd.f32 %v386, 1.0
      %v419 = vadd.f32 %v387, 1.0
      %v420 = vadd.f32 %v388, 1.0
      %v421 = vadd.f32 %v389, 1.0
      %v422 = vadd.f32 %v390, 1.0
      %v423 = vadd.f32 %v391, 1.0
      %v424 = vadd.f32 %v392, 1.0
      %v425 = vadd.f32 %v393, 1.0
      %v426 = vadd.f32 %v394, 1.0
      %v427 = vadd.f32 %v395, 1.0
      %v428 = vadd.f32 %v396, 1.0
      %v429 = vadd.f32 %v397, 1.0
      %v430 = vadd.f32 %v398, 1.0
      %v431 = vadd.f32 %v399, 1.0
      %v432 = vadd.f32 %v400, 1.0
      %v433 = vadd.f32 %v401, 1.0
      %v434 = vadd.f32 %v402, 1.0
      %v435 = vadd.f32 %v403, 1.0
      %v436 = vadd.f32 %v404, 1.0
      %v437 = vadd.f32 %v405, 1.0
      %v438 = vadd.f32 %v406, 1.0
      %v439 = vadd.f32 %v407, 1.0
      %v440 = vadd.f32 %v408, 1.0
      %v441 = vadd.f32 %v409, 1.0
      %v442 = vadd.f32 %v410, 1.0
      %v443 = vadd.f32 %v411, 1.0
      %v444 = vmul.f32 %v316, %v412
      %v445 = vmul.f32 %v317, %v413
      %v446 = vmul.f32 %v318, %v414
      %v447 = vmul.f32 %v319, %v415
      %v448 = vmul.f32 %v320, %v416
      %v449 = vmul.f32 %v321, %v417
      %v450 = vmul.f32 %v322, %v418
      %v451 = vmul.f32 %v323, %v419
      %v452 = vmul.f32 %v324, %v420
      %v453 = vmul.f32 %v325, %v421
      %v454 = vmul.f32 %v326, %v422
      %v455 = vmul.f32 %v327, %v423
      %v456 = vmul.f32 %v328, %v424
      %v457 = vmul.f32 %v329, %v425
      %v458 = vmul.f32 %v330, %v426
      %v459 = vmul.f32 %v331, %v427
      %v460 = vmul.f32 %v332, %v428
      %v461 = vmul.f32 %v333, %v429
      %v462 = vmul.f32 %v334, %v430
      %v463 = vmul.f32 %v335, %v431
      %v464 = vmul.f32 %v336, %v432
      %v465 = vmul.f32 %v337, %v433
      %v466 = vmul.f32 %v338, %v434
      %v467 = vmul.f32 %v339, %v435
      %v468 = vmul.f32 %v340, %v436
      %v469 = vmul.f32 %v341, %v437
      %v470 = vmul.f32 %v342, %v438
      %v471 = vmul.f32 %v343, %v439
      %v472 = vmul.f32 %v344, %v440
      %v473 = vmul.f32 %v345, %v441
      %v474 = vmul.f32 %v346, %v442
      %v475 = vmul.f32 %v347, %v443
      %476 = vst [vmem:[%s172] sm:$0xff] %v444
      %477 = vst [vmem:[%s172 + $0x8] sm:$0xff] %v445
      %478 = vst [vmem:[%s172 + $0x10] sm:$0xff] %v446
      %479 = vst [vmem:[%s172 + $0x18] sm:$0xff] %v447
      %480 = vst [vmem:[%s172 + $0x20] sm:$0xff] %v448
      %481 = vst [vmem:[%s172 + $0x28] sm:$0xff] %v449
      %482 = vst [vmem:[%s172 + $0x30] sm:$0xff] %v450
      %483 = vst [vmem:[%s172 + $0x38] sm:$0xff] %v451
      %484 = vst [vmem:[%s172 + $0x40] sm:$0xff] %v452
      %485 = vst [vmem:[%s172 + $0x48] sm:$0xff] %v453
      %486 = vst [vmem:[%s172 + $0x50] sm:$0xff] %v454
      %487 = vst [vmem:[%s172 + $0x58] sm:$0xff] %v455
      %488 = vst [vmem:[%s172 + $0x60] sm:$0xff] %v456
      %489 = vst [vmem:[%s172 + $0x68] sm:$0xff] %v457
      %490 = vst [vmem:[%s172 + $0x70] sm:$0xff] %v458
      %491 = vst [vmem:[%s172 + $0x78] sm:$0xff] %v459
      %492 = vst [vmem:[%s172 + $0x80] sm:$0xff] %v460
      %493 = vst [vmem:[%s172 + $0x88] sm:$0xff] %v461
      %494 = vst [vmem:[%s172 + $0x90] sm:$0xff] %v462
      %495 = vst [vmem:[%s172 + $0x98] sm:$0xff] %v463
      %496 = vst [vmem:[%s172 + $0xa0] sm:$0xff] %v464
      %497 = vst [vmem:[%s172 + $0xa8] sm:$0xff] %v465
      %498 = vst [vmem:[%s172 + $0xb0] sm:$0xff] %v466
      %499 = vst [vmem:[%s172 + $0xb8] sm:$0xff] %v467
      %500 = vst [vmem:[%s172 + $0xc0] sm:$0xff] %v468
      %501 = vst [vmem:[%s172 + $0xc8] sm:$0xff] %v469
      %502 = vst [vmem:[%s172 + $0xd0] sm:$0xff] %v470
      %503 = vst [vmem:[%s172 + $0xd8] sm:$0xff] %v471
      %504 = vst [vmem:[%s172 + $0xe0] sm:$0xff] %v472
      %505 = vst [vmem:[%s172 + $0xe8] sm:$0xff] %v473
      %506 = vst [vmem:[%s172 + $0xf0] sm:$0xff] %v474
      %507 = vst [vmem:[%s172 + $0xf8] sm:$0xff] %v475
      %s508 = smul.u32 32, %s14
      %p509 = scmp.lt.s32.totalorder %s508, 127
      %s510 = scalar_select %p509, %s508, 127
      %s511 = smul.addr %s510, 8
      %s512 = scalar_lea.vmem %s3, %s511
      // Predicated region
      $region33: #{octree_deconv_bn_elu.3} parent=31 // pred_check
        %p513 = pneg %p100
      $region34: #{octree_deconv_bn_elu.3} parent=31 // pred_check_branch
        %515 = sbr.rel (%p513) target = $region36
      $region35: #{octree_deconv_bn_elu.3} parent=31 // pred_region
        %s516 = smul.u32 32, %s14
      $region36: #{octree_deconv_bn_elu.3} parent=31 // pred_fallthru
        _
    $region32: #{octree_deconv_bn_elu.3} parent=5 // pred_fallthru
      _
    %p517 = scmp.le.s32.totalorder 2, %s9
    // Predicated region
    $region37: #{octree_deconv_bn_elu.3} parent=5 // pred_check
      %p518 = pneg %p517
    $region38: #{octree_deconv_bn_elu.3} parent=5 // pred_check_branch
      %520 = sbr.rel (%p518) target = $region40
    $region39: #{octree_deconv_bn_elu.3} parent=5 // pred_region
      %s521 = ssub.s32 %s9, 2
      // Predicated region
      $region41: #{octree_deconv_bn_elu.3} parent=39 // pred_check
        %p522 = pneg %p106
      $region42: #{octree_deconv_bn_elu.3} parent=39 // pred_check_branch
        %524 = sbr.rel (%p522) target = $region44
      $region43: #{octree_deconv_bn_elu.3} parent=39 // pred_region
        %s525 = smul.u32 32, %s15
        %p526 = scmp.lt.s32.totalorder %s525, 127
        %s527 = scalar_select %p526, %s525, 127
        %s528 = smul.addr %s527, 8
        %s529 = scalar_lea.vmem %s3, %s528
      $region44: #{octree_deconv_bn_elu.3} parent=39 // pred_fallthru
        _
    $region40: #{octree_deconv_bn_elu.3} parent=5 // pred_fallthru
      _
  $region6: #{octree_deconv_bn_elu.3} parent=0 // loop_footer
    %s13 = sadd.s32 1, %s9
  $region7: #{octree_deconv_bn_elu.3} parent=0 // loop_footer_branch
    %8 = sbr.rel target = $region3
  $region8: #{octree_deconv_bn_elu.3} parent=0 // loop_exit
    _

</llo_original>
